<compile_context>
chip_gen: v7x
topology: tpu7x:2x2x1
jax: 0.10.0
libtpu: 0.0.40
codegen_flags: <defaults>
</compile_context>

<pallas_src>
import functools

import numpy as np
import jax
import jax.numpy as jnp
from jax import lax
from jax.experimental import pallas as pl
from jax.experimental.pallas import tpu as pltpu


def _bottleneck_kernel(x_ref, mask_ref,
                       w1_ref, b1_ref, w2_ref, b2_ref, w3_ref, b3_ref,
                       o_ref, *, H, W, Cin, Cmid, Cout, Nb):
    HW = H * W

    # ---- grid-invariant reads hoisted out of the per-image loop ----
    masks = [mask_ref[k:k + 1, :] for k in range(9)]          # 9 x (1, HW) {0,1} f32

    w1 = [[w1_ref[co, ci] for ci in range(Cin)] for co in range(Cmid)]
    b1 = [b1_ref[co] for co in range(Cmid)]
    w2 = [[[w2_ref[co, ci * 9 + k] for k in range(9)] for ci in range(Cmid)]
          for co in range(Cmid)]
    b2 = [b2_ref[co] for co in range(Cmid)]
    w3 = [[w3_ref[co, cm] for cm in range(Cmid)] for co in range(Cout)]
    b3 = [b3_ref[co] for co in range(Cout)]

    for n in range(Nb):                                       # static unroll (Nb small)
        # Per-channel lane-dense rows of the input image, (1, HW) each.
        xrows = [x_ref[n, ci:ci + 1, :] for ci in range(Cin)]

        # ---- conv1: 1x1 (Cin -> Cmid) + bias + ReLU  (VPU scalar-weight FMAs)
        mid = []
        for co in range(Cmid):
            acc = w1[co][0] * xrows[0]
            for ci in range(1, Cin):
                acc = acc + w1[co][ci] * xrows[ci]
            mid.append(jnp.maximum(acc + b1[co], 0.0))        # (1, HW) f32

        # ---- conv2: 3x3 same padding. Taps = XLU lane rolls + border masks.
        taps = []
        for ci in range(Cmid):
            ch = []
            for kh in range(3):
                for kw in range(3):
                    off = (kh - 1) * W + (kw - 1)
                    if off == 0:
                        t = mid[ci]
                    else:
                        # tap[p] = mid[p + off] (circular), wrapped lanes are
                        # zeroed by the border mask below.
                        t = pltpu.roll(mid[ci], (-off) % HW, axis=1)
                    ch.append(t * masks[kh * 3 + kw])
                    del t
            taps.append(ch)

        mid2 = []
        for co in range(Cmid):
            acc = None
            for ci in range(Cmid):
                for k in range(9):
                    term = w2[co][ci][k] * taps[ci][k]
                    acc = term if acc is None else acc + term
            mid2.append(jnp.maximum(acc + b2[co], 0.0))       # (1, HW) f32

        # ---- conv3: 1x1 (Cmid -> Cout) + bias, lane-dense row stores
        for co in range(Cout):
            acc = w3[co][0] * mid2[0]
            for cm in range(1, Cmid):
                acc = acc + w3[co][cm] * mid2[cm]
            o_ref[n, co:co + 1, :] = (acc + b3[co]).astype(o_ref.dtype)


def bottleneck_conv2d(x_nchw, w1_oihw, b1, w2_oihw, b2, w3_oihw, b3,
                      *, images_per_step=None):
    """x_nchw: (N, Cin, H, W). Weights in PyTorch OIHW layout. Returns NCHW."""
    N, Cin, H, W = x_nchw.shape
    Cmid = w1_oihw.shape[0]
    Cout = w3_oihw.shape[0]
    HW = H * W

    if images_per_step is None:
        # Keep >=2 grid steps when possible (both v7x TensorCores get work);
        # larger blocks amortize per-step overhead on 1-TC parts.
        images_per_step = N // 2 if (N >= 2 and N % 2 == 0) else 1
    Nb = max(1, images_per_step)
    assert N % Nb == 0, "images_per_step must divide the batch"
    grid_n = N // Nb

    # Free, contiguous reshape: NCHW -> (N, C, H*W). Lane dim = H*W.
    x_flat = x_nchw.reshape(N, Cin, HW)

    # Scalar-weight layouts for SMEM (the kernel reads them as scalars).
    w1_s = w1_oihw[:, :, 0, 0]                     # (Cmid, Cin)
    w2_s = w2_oihw.reshape(Cmid, Cmid * 9)         # [co, ci*9 + kh*3 + kw]
    w3_s = w3_oihw[:, :, 0, 0]                     # (Cout, Cmid)

    # Grid-invariant border-validity masks for the 9 taps, built once host-side.
    hh = np.arange(HW) // W
    ww = np.arange(HW) % W
    rows = []
    for kh in range(3):
        for kw in range(3):
            dh, dw = kh - 1, kw - 1
            valid = np.ones(HW, dtype=bool)
            if dh == -1:
                valid &= hh >= 1
            if dh == 1:
                valid &= hh <= H - 2
            if dw == -1:
                valid &= ww >= 1
            if dw == 1:
                valid &= ww <= W - 2
            rows.append(valid)
    masks = jnp.asarray(np.stack(rows).astype(np.float32))    # (9, HW)

    kernel = functools.partial(_bottleneck_kernel, H=H, W=W,
                               Cin=Cin, Cmid=Cmid, Cout=Cout, Nb=Nb)

    itemsize = jnp.dtype(x_nchw.dtype).itemsize
    flops = 2 * N * HW * (Cin * Cmid + 9 * Cmid * Cmid + Cmid * Cout)
    bytes_accessed = int((N * Cin * HW + N * Cout * HW) * itemsize
                         + masks.size * 4
                         + (w1_s.size + w2_s.size + w3_s.size
                            + b1.size + b2.size + b3.size) * 4)

    smem_spec = pl.BlockSpec(memory_space=pltpu.MemorySpace.SMEM)

    out_flat = pl.pallas_call(
        kernel,
        out_shape=jax.ShapeDtypeStruct((N, Cout, HW), x_nchw.dtype),
        grid_spec=pltpu.PrefetchScalarGridSpec(
            num_scalar_prefetch=0,
            grid=(grid_n,),
            in_specs=[
                pl.BlockSpec((Nb, Cin, HW), lambda n: (n, 0, 0)),   # x
                pl.BlockSpec((9, HW), lambda n: (0, 0)),            # border masks
                smem_spec,   # w1 (Cmid, Cin)
                smem_spec,   # b1 (Cmid,)
                smem_spec,   # w2 (Cmid, Cmid*9)
                smem_spec,   # b2 (Cmid,)
                smem_spec,   # w3 (Cout, Cmid)
                smem_spec,   # b3 (Cout,)
            ],
            out_specs=pl.BlockSpec((Nb, Cout, HW), lambda n: (n, 0, 0)),
        ),
        compiler_params=pltpu.CompilerParams(
            dimension_semantics=("parallel",),
            vmem_limit_bytes=32 * 1024 * 1024),
        cost_estimate=pl.CostEstimate(flops=flops, transcendentals=0,
                                      bytes_accessed=bytes_accessed),
    )(x_flat, masks, w1_s, b1, w2_s, b2, w3_s, b3)

    # Free reshape back to NCHW.
    return out_flat.reshape(N, Cout, H, W)


def _reference(x_nchw, w1, b1, w2, b2, w3, b3):
    """Pure-JAX reference (lax convs, NCHW/OIHW) for correctness checking."""
    dn = ("NCHW", "OIHW", "NCHW")
    y = lax.conv_general_dilated(x_nchw, w1, (1, 1), "VALID", dimension_numbers=dn)
    y = jnp.maximum(y + b1[None, :, None, None], 0.0)
    y = lax.conv_general_dilated(y, w2, (1, 1), ((1, 1), (1, 1)), dimension_numbers=dn)
    y = jnp.maximum(y + b2[None, :, None, None], 0.0)
    y = lax.conv_general_dilated(y, w3, (1, 1), "VALID", dimension_numbers=dn)
    return y + b3[None, :, None, None]


if __name__ == "__main__":
    N, Cin, H, W = 2, 4, 16, 16
    Cmid, Cout = 2, 4

    key = jax.random.PRNGKey(0)
    kx, k1, k2, k3, kb1, kb2, kb3 = jax.random.split(key, 7)

    x = jax.random.normal(kx, (N, Cin, H, W), dtype=jnp.float32)
    # Deterministic parameter init (PyTorch OIHW layouts).
    w1 = 0.1 * jax.random.normal(k1, (Cmid, Cin, 1, 1), dtype=jnp.float32)
    b1 = 0.1 * jax.random.normal(kb1, (Cmid,), dtype=jnp.float32)
    w2 = 0.1 * jax.random.normal(k2, (Cmid, Cmid, 3, 3), dtype=jnp.float32)
    b2 = 0.1 * jax.random.normal(kb2, (Cmid,), dtype=jnp.float32)
    w3 = 0.1 * jax.random.normal(k3, (Cout, Cmid, 1, 1), dtype=jnp.float32)
    b3 = 0.1 * jax.random.normal(kb3, (Cout,), dtype=jnp.float32)

    out = bottleneck_conv2d(x, w1, b1, w2, b2, w3, b3)
    out = jax.block_until_ready(out)

    ref = _reference(x, w1, b1, w2, b2, w3, b3)
    assert out.shape == (N, Cout, H, W)
    assert jnp.max(jnp.abs(out - ref)) < 1e-4, "mismatch vs lax reference"

    print("KERNEL_OK")
</pallas_src>

<mosaic_0001>
module attributes {stable_mosaic.version = 11 : i64} {
  func.func @_bottleneck_kernel(%arg0: i32, %arg1: memref<1x4x256xf32, #tpu.memory_space<vmem>>, %arg2: memref<9x256xf32, #tpu.memory_space<vmem>>, %arg3: memref<2x4xf32, #tpu.memory_space<smem>>, %arg4: memref<2xf32, #tpu.memory_space<smem>>, %arg5: memref<2x18xf32, #tpu.memory_space<smem>>, %arg6: memref<2xf32, #tpu.memory_space<smem>>, %arg7: memref<4x2xf32, #tpu.memory_space<smem>>, %arg8: memref<4xf32, #tpu.memory_space<smem>>, %arg9: memref<1x4x256xf32, #tpu.memory_space<vmem>>) attributes {dimension_semantics = [#tpu.dimension_semantics<parallel>], iteration_bounds = array<i64: 2>, scalar_prefetch = 0 : i64, scratch_operands = 0 : i64, tpu.core_type = #tpu.core_type<tc>, window_params = [{transform_indices = @transform_0, window_bounds = array<i64: 1, 4, 256>}, {pipeline_mode = #tpu.pipeline_mode<synchronous>, transform_indices = @transform_1, window_bounds = array<i64: 9, 256>}, {transform_indices = @transform_2, window_bounds = array<i64: 2, 4>}, {transform_indices = @transform_3, window_bounds = array<i64: 2>}, {transform_indices = @transform_4, window_bounds = array<i64: 2, 18>}, {transform_indices = @transform_5, window_bounds = array<i64: 2>}, {transform_indices = @transform_6, window_bounds = array<i64: 4, 2>}, {transform_indices = @transform_7, window_bounds = array<i64: 4>}, {transform_indices = @transform_8, window_bounds = array<i64: 1, 4, 256>}]} {
    %c0 = arith.constant 0 : index
    %c0_0 = arith.constant 0 : index
    %0 = vector.load %arg2[%c0, %c0_0] : memref<9x256xf32, #tpu.memory_space<vmem>>, vector<1x256xf32>
    %c1 = arith.constant 1 : index
    %c0_1 = arith.constant 0 : index
    %1 = vector.load %arg2[%c1, %c0_1] : memref<9x256xf32, #tpu.memory_space<vmem>>, vector<1x256xf32>
    %c2 = arith.constant 2 : index
    %c0_2 = arith.constant 0 : index
    %2 = vector.load %arg2[%c2, %c0_2] : memref<9x256xf32, #tpu.memory_space<vmem>>, vector<1x256xf32>
    %c3 = arith.constant 3 : index
    %c0_3 = arith.constant 0 : index
    %3 = vector.load %arg2[%c3, %c0_3] : memref<9x256xf32, #tpu.memory_space<vmem>>, vector<1x256xf32>
    %c4 = arith.constant 4 : index
    %c0_4 = arith.constant 0 : index
    %4 = vector.load %arg2[%c4, %c0_4] : memref<9x256xf32, #tpu.memory_space<vmem>>, vector<1x256xf32>
    %c5 = arith.constant 5 : index
    %c0_5 = arith.constant 0 : index
    %5 = vector.load %arg2[%c5, %c0_5] : memref<9x256xf32, #tpu.memory_space<vmem>>, vector<1x256xf32>
    %c6 = arith.constant 6 : index
    %c0_6 = arith.constant 0 : index
    %6 = vector.load %arg2[%c6, %c0_6] : memref<9x256xf32, #tpu.memory_space<vmem>>, vector<1x256xf32>
    %c7 = arith.constant 7 : index
    %c0_7 = arith.constant 0 : index
    %7 = vector.load %arg2[%c7, %c0_7] : memref<9x256xf32, #tpu.memory_space<vmem>>, vector<1x256xf32>
    %c8 = arith.constant 8 : index
    %c0_8 = arith.constant 0 : index
    %8 = vector.load %arg2[%c8, %c0_8] : memref<9x256xf32, #tpu.memory_space<vmem>>, vector<1x256xf32>
    %c0_9 = arith.constant 0 : index
    %c0_10 = arith.constant 0 : index
    %9 = memref.load %arg3[%c0_9, %c0_10] : memref<2x4xf32, #tpu.memory_space<smem>>
    %c0_11 = arith.constant 0 : index
    %c1_12 = arith.constant 1 : index
    %10 = memref.load %arg3[%c0_11, %c1_12] : memref<2x4xf32, #tpu.memory_space<smem>>
    %c0_13 = arith.constant 0 : index
    %c2_14 = arith.constant 2 : index
    %11 = memref.load %arg3[%c0_13, %c2_14] : memref<2x4xf32, #tpu.memory_space<smem>>
    %c0_15 = arith.constant 0 : index
    %c3_16 = arith.constant 3 : index
    %12 = memref.load %arg3[%c0_15, %c3_16] : memref<2x4xf32, #tpu.memory_space<smem>>
    %c1_17 = arith.constant 1 : index
    %c0_18 = arith.constant 0 : index
    %13 = memref.load %arg3[%c1_17, %c0_18] : memref<2x4xf32, #tpu.memory_space<smem>>
    %c1_19 = arith.constant 1 : index
    %c1_20 = arith.constant 1 : index
    %14 = memref.load %arg3[%c1_19, %c1_20] : memref<2x4xf32, #tpu.memory_space<smem>>
    %c1_21 = arith.constant 1 : index
    %c2_22 = arith.constant 2 : index
    %15 = memref.load %arg3[%c1_21, %c2_22] : memref<2x4xf32, #tpu.memory_space<smem>>
    %c1_23 = arith.constant 1 : index
    %c3_24 = arith.constant 3 : index
    %16 = memref.load %arg3[%c1_23, %c3_24] : memref<2x4xf32, #tpu.memory_space<smem>>
    %c0_25 = arith.constant 0 : index
    %17 = memref.load %arg4[%c0_25] : memref<2xf32, #tpu.memory_space<smem>>
    %c1_26 = arith.constant 1 : index
    %18 = memref.load %arg4[%c1_26] : memref<2xf32, #tpu.memory_space<smem>>
    %c0_27 = arith.constant 0 : index
    %c0_28 = arith.constant 0 : index
    %19 = memref.load %arg5[%c0_27, %c0_28] : memref<2x18xf32, #tpu.memory_space<smem>>
    %c0_29 = arith.constant 0 : index
    %c1_30 = arith.constant 1 : index
    %20 = memref.load %arg5[%c0_29, %c1_30] : memref<2x18xf32, #tpu.memory_space<smem>>
    %c0_31 = arith.constant 0 : index
    %c2_32 = arith.constant 2 : index
    %21 = memref.load %arg5[%c0_31, %c2_32] : memref<2x18xf32, #tpu.memory_space<smem>>
    %c0_33 = arith.constant 0 : index
    %c3_34 = arith.constant 3 : index
    %22 = memref.load %arg5[%c0_33, %c3_34] : memref<2x18xf32, #tpu.memory_space<smem>>
    %c0_35 = arith.constant 0 : index
    %c4_36 = arith.constant 4 : index
    %23 = memref.load %arg5[%c0_35, %c4_36] : memref<2x18xf32, #tpu.memory_space<smem>>
    %c0_37 = arith.constant 0 : index
    %c5_38 = arith.constant 5 : index
    %24 = memref.load %arg5[%c0_37, %c5_38] : memref<2x18xf32, #tpu.memory_space<smem>>
    %c0_39 = arith.constant 0 : index
    %c6_40 = arith.constant 6 : index
    %25 = memref.load %arg5[%c0_39, %c6_40] : memref<2x18xf32, #tpu.memory_space<smem>>
    %c0_41 = arith.constant 0 : index
    %c7_42 = arith.constant 7 : index
    %26 = memref.load %arg5[%c0_41, %c7_42] : memref<2x18xf32, #tpu.memory_space<smem>>
    %c0_43 = arith.constant 0 : index
    %c8_44 = arith.constant 8 : index
    %27 = memref.load %arg5[%c0_43, %c8_44] : memref<2x18xf32, #tpu.memory_space<smem>>
    %c0_45 = arith.constant 0 : index
    %c9 = arith.constant 9 : index
    %28 = memref.load %arg5[%c0_45, %c9] : memref<2x18xf32, #tpu.memory_space<smem>>
    %c0_46 = arith.constant 0 : index
    %c10 = arith.constant 10 : index
    %29 = memref.load %arg5[%c0_46, %c10] : memref<2x18xf32, #tpu.memory_space<smem>>
    %c0_47 = arith.constant 0 : index
    %c11 = arith.constant 11 : index
    %30 = memref.load %arg5[%c0_47, %c11] : memref<2x18xf32, #tpu.memory_space<smem>>
    %c0_48 = arith.constant 0 : index
    %c12 = arith.constant 12 : index
    %31 = memref.load %arg5[%c0_48, %c12] : memref<2x18xf32, #tpu.memory_space<smem>>
    %c0_49 = arith.constant 0 : index
    %c13 = arith.constant 13 : index
    %32 = memref.load %arg5[%c0_49, %c13] : memref<2x18xf32, #tpu.memory_space<smem>>
    %c0_50 = arith.constant 0 : index
    %c14 = arith.constant 14 : index
    %33 = memref.load %arg5[%c0_50, %c14] : memref<2x18xf32, #tpu.memory_space<smem>>
    %c0_51 = arith.constant 0 : index
    %c15 = arith.constant 15 : index
    %34 = memref.load %arg5[%c0_51, %c15] : memref<2x18xf32, #tpu.memory_space<smem>>
    %c0_52 = arith.constant 0 : index
    %c16 = arith.constant 16 : index
    %35 = memref.load %arg5[%c0_52, %c16] : memref<2x18xf32, #tpu.memory_space<smem>>
    %c0_53 = arith.constant 0 : index
    %c17 = arith.constant 17 : index
    %36 = memref.load %arg5[%c0_53, %c17] : memref<2x18xf32, #tpu.memory_space<smem>>
    %c1_54 = arith.constant 1 : index
    %c0_55 = arith.constant 0 : index
    %37 = memref.load %arg5[%c1_54, %c0_55] : memref<2x18xf32, #tpu.memory_space<smem>>
    %c1_56 = arith.constant 1 : index
    %c1_57 = arith.constant 1 : index
    %38 = memref.load %arg5[%c1_56, %c1_57] : memref<2x18xf32, #tpu.memory_space<smem>>
    %c1_58 = arith.constant 1 : index
    %c2_59 = arith.constant 2 : index
    %39 = memref.load %arg5[%c1_58, %c2_59] : memref<2x18xf32, #tpu.memory_space<smem>>
    %c1_60 = arith.constant 1 : index
    %c3_61 = arith.constant 3 : index
    %40 = memref.load %arg5[%c1_60, %c3_61] : memref<2x18xf32, #tpu.memory_space<smem>>
    %c1_62 = arith.constant 1 : index
    %c4_63 = arith.constant 4 : index
    %41 = memref.load %arg5[%c1_62, %c4_63] : memref<2x18xf32, #tpu.memory_space<smem>>
    %c1_64 = arith.constant 1 : index
    %c5_65 = arith.constant 5 : index
    %42 = memref.load %arg5[%c1_64, %c5_65] : memref<2x18xf32, #tpu.memory_space<smem>>
    %c1_66 = arith.constant 1 : index
    %c6_67 = arith.constant 6 : index
    %43 = memref.load %arg5[%c1_66, %c6_67] : memref<2x18xf32, #tpu.memory_space<smem>>
    %c1_68 = arith.constant 1 : index
    %c7_69 = arith.constant 7 : index
    %44 = memref.load %arg5[%c1_68, %c7_69] : memref<2x18xf32, #tpu.memory_space<smem>>
    %c1_70 = arith.constant 1 : index
    %c8_71 = arith.constant 8 : index
    %45 = memref.load %arg5[%c1_70, %c8_71] : memref<2x18xf32, #tpu.memory_space<smem>>
    %c1_72 = arith.constant 1 : index
    %c9_73 = arith.constant 9 : index
    %46 = memref.load %arg5[%c1_72, %c9_73] : memref<2x18xf32, #tpu.memory_space<smem>>
    %c1_74 = arith.constant 1 : index
    %c10_75 = arith.constant 10 : index
    %47 = memref.load %arg5[%c1_74, %c10_75] : memref<2x18xf32, #tpu.memory_space<smem>>
    %c1_76 = arith.constant 1 : index
    %c11_77 = arith.constant 11 : index
    %48 = memref.load %arg5[%c1_76, %c11_77] : memref<2x18xf32, #tpu.memory_space<smem>>
    %c1_78 = arith.constant 1 : index
    %c12_79 = arith.constant 12 : index
    %49 = memref.load %arg5[%c1_78, %c12_79] : memref<2x18xf32, #tpu.memory_space<smem>>
    %c1_80 = arith.constant 1 : index
    %c13_81 = arith.constant 13 : index
    %50 = memref.load %arg5[%c1_80, %c13_81] : memref<2x18xf32, #tpu.memory_space<smem>>
    %c1_82 = arith.constant 1 : index
    %c14_83 = arith.constant 14 : index
    %51 = memref.load %arg5[%c1_82, %c14_83] : memref<2x18xf32, #tpu.memory_space<smem>>
    %c1_84 = arith.constant 1 : index
    %c15_85 = arith.constant 15 : index
    %52 = memref.load %arg5[%c1_84, %c15_85] : memref<2x18xf32, #tpu.memory_space<smem>>
    %c1_86 = arith.constant 1 : index
    %c16_87 = arith.constant 16 : index
    %53 = memref.load %arg5[%c1_86, %c16_87] : memref<2x18xf32, #tpu.memory_space<smem>>
    %c1_88 = arith.constant 1 : index
    %c17_89 = arith.constant 17 : index
    %54 = memref.load %arg5[%c1_88, %c17_89] : memref<2x18xf32, #tpu.memory_space<smem>>
    %c0_90 = arith.constant 0 : index
    %55 = memref.load %arg6[%c0_90] : memref<2xf32, #tpu.memory_space<smem>>
    %c1_91 = arith.constant 1 : index
    %56 = memref.load %arg6[%c1_91] : memref<2xf32, #tpu.memory_space<smem>>
    %c0_92 = arith.constant 0 : index
    %c0_93 = arith.constant 0 : index
    %57 = memref.load %arg7[%c0_92, %c0_93] : memref<4x2xf32, #tpu.memory_space<smem>>
    %c0_94 = arith.constant 0 : index
    %c1_95 = arith.constant 1 : index
    %58 = memref.load %arg7[%c0_94, %c1_95] : memref<4x2xf32, #tpu.memory_space<smem>>
    %c1_96 = arith.constant 1 : index
    %c0_97 = arith.constant 0 : index
    %59 = memref.load %arg7[%c1_96, %c0_97] : memref<4x2xf32, #tpu.memory_space<smem>>
    %c1_98 = arith.constant 1 : index
    %c1_99 = arith.constant 1 : index
    %60 = memref.load %arg7[%c1_98, %c1_99] : memref<4x2xf32, #tpu.memory_space<smem>>
    %c2_100 = arith.constant 2 : index
    %c0_101 = arith.constant 0 : index
    %61 = memref.load %arg7[%c2_100, %c0_101] : memref<4x2xf32, #tpu.memory_space<smem>>
    %c2_102 = arith.constant 2 : index
    %c1_103 = arith.constant 1 : index
    %62 = memref.load %arg7[%c2_102, %c1_103] : memref<4x2xf32, #tpu.memory_space<smem>>
    %c3_104 = arith.constant 3 : index
    %c0_105 = arith.constant 0 : index
    %63 = memref.load %arg7[%c3_104, %c0_105] : memref<4x2xf32, #tpu.memory_space<smem>>
    %c3_106 = arith.constant 3 : index
    %c1_107 = arith.constant 1 : index
    %64 = memref.load %arg7[%c3_106, %c1_107] : memref<4x2xf32, #tpu.memory_space<smem>>
    %c0_108 = arith.constant 0 : index
    %65 = memref.load %arg8[%c0_108] : memref<4xf32, #tpu.memory_space<smem>>
    %c1_109 = arith.constant 1 : index
    %66 = memref.load %arg8[%c1_109] : memref<4xf32, #tpu.memory_space<smem>>
    %c2_110 = arith.constant 2 : index
    %67 = memref.load %arg8[%c2_110] : memref<4xf32, #tpu.memory_space<smem>>
    %c3_111 = arith.constant 3 : index
    %68 = memref.load %arg8[%c3_111] : memref<4xf32, #tpu.memory_space<smem>>
    %c0_112 = arith.constant 0 : index
    %c0_113 = arith.constant 0 : index
    %c0_114 = arith.constant 0 : index
    %69 = vector.load %arg1[%c0_112, %c0_113, %c0_114] : memref<1x4x256xf32, #tpu.memory_space<vmem>>, vector<1x1x256xf32>
    %70 = vector.shape_cast %69 : vector<1x1x256xf32> to vector<1x256xf32>
    %c0_115 = arith.constant 0 : index
    %c1_116 = arith.constant 1 : index
    %c0_117 = arith.constant 0 : index
    %71 = vector.load %arg1[%c0_115, %c1_116, %c0_117] : memref<1x4x256xf32, #tpu.memory_space<vmem>>, vector<1x1x256xf32>
    %72 = vector.shape_cast %71 : vector<1x1x256xf32> to vector<1x256xf32>
    %c0_118 = arith.constant 0 : index
    %c2_119 = arith.constant 2 : index
    %c0_120 = arith.constant 0 : index
    %73 = vector.load %arg1[%c0_118, %c2_119, %c0_120] : memref<1x4x256xf32, #tpu.memory_space<vmem>>, vector<1x1x256xf32>
    %74 = vector.shape_cast %73 : vector<1x1x256xf32> to vector<1x256xf32>
    %c0_121 = arith.constant 0 : index
    %c3_122 = arith.constant 3 : index
    %c0_123 = arith.constant 0 : index
    %75 = vector.load %arg1[%c0_121, %c3_122, %c0_123] : memref<1x4x256xf32, #tpu.memory_space<vmem>>, vector<1x1x256xf32>
    %76 = vector.shape_cast %75 : vector<1x1x256xf32> to vector<1x256xf32>
    %77 = vector.broadcast %9 : f32 to vector<1x256xf32>
    %78 = arith.mulf %77, %70 : vector<1x256xf32>
    %79 = vector.broadcast %10 : f32 to vector<1x256xf32>
    %80 = arith.mulf %79, %72 : vector<1x256xf32>
    %81 = arith.addf %78, %80 : vector<1x256xf32>
    %82 = vector.broadcast %11 : f32 to vector<1x256xf32>
    %83 = arith.mulf %82, %74 : vector<1x256xf32>
    %84 = arith.addf %81, %83 : vector<1x256xf32>
    %85 = vector.broadcast %12 : f32 to vector<1x256xf32>
    %86 = arith.mulf %85, %76 : vector<1x256xf32>
    %87 = arith.addf %84, %86 : vector<1x256xf32>
    %88 = vector.broadcast %17 : f32 to vector<1x256xf32>
    %89 = arith.addf %87, %88 : vector<1x256xf32>
    %cst = arith.constant 0.000000e+00 : f32
    %90 = vector.broadcast %cst : f32 to vector<1x256xf32>
    %91 = arith.maximumf %89, %90 : vector<1x256xf32>
    %92 = vector.broadcast %13 : f32 to vector<1x256xf32>
    %93 = arith.mulf %92, %70 : vector<1x256xf32>
    %94 = vector.broadcast %14 : f32 to vector<1x256xf32>
    %95 = arith.mulf %94, %72 : vector<1x256xf32>
    %96 = arith.addf %93, %95 : vector<1x256xf32>
    %97 = vector.broadcast %15 : f32 to vector<1x256xf32>
    %98 = arith.mulf %97, %74 : vector<1x256xf32>
    %99 = arith.addf %96, %98 : vector<1x256xf32>
    %100 = vector.broadcast %16 : f32 to vector<1x256xf32>
    %101 = arith.mulf %100, %76 : vector<1x256xf32>
    %102 = arith.addf %99, %101 : vector<1x256xf32>
    %103 = vector.broadcast %18 : f32 to vector<1x256xf32>
    %104 = arith.addf %102, %103 : vector<1x256xf32>
    %cst_124 = arith.constant 0.000000e+00 : f32
    %105 = vector.broadcast %cst_124 : f32 to vector<1x256xf32>
    %106 = arith.maximumf %104, %105 : vector<1x256xf32>
    %c17_i32 = arith.constant 17 : i32
    %107 = tpu.dynamic_rotate %91 by %c17_i32 dim 1 : vector<1x256xf32>, i32 -> vector<1x256xf32>
    %108 = arith.mulf %107, %0 : vector<1x256xf32>
    %c16_i32 = arith.constant 16 : i32
    %109 = tpu.dynamic_rotate %91 by %c16_i32 dim 1 : vector<1x256xf32>, i32 -> vector<1x256xf32>
    %110 = arith.mulf %109, %1 : vector<1x256xf32>
    %c15_i32 = arith.constant 15 : i32
    %111 = tpu.dynamic_rotate %91 by %c15_i32 dim 1 : vector<1x256xf32>, i32 -> vector<1x256xf32>
    %112 = arith.mulf %111, %2 : vector<1x256xf32>
    %c1_i32 = arith.constant 1 : i32
    %113 = tpu.dynamic_rotate %91 by %c1_i32 dim 1 : vector<1x256xf32>, i32 -> vector<1x256xf32>
    %114 = arith.mulf %113, %3 : vector<1x256xf32>
    %115 = arith.mulf %91, %4 : vector<1x256xf32>
    %c255_i32 = arith.constant 255 : i32
    %116 = tpu.dynamic_rotate %91 by %c255_i32 dim 1 : vector<1x256xf32>, i32 -> vector<1x256xf32>
    %117 = arith.mulf %116, %5 : vector<1x256xf32>
    %c241_i32 = arith.constant 241 : i32
    %118 = tpu.dynamic_rotate %91 by %c241_i32 dim 1 : vector<1x256xf32>, i32 -> vector<1x256xf32>
    %119 = arith.mulf %118, %6 : vector<1x256xf32>
    %c240_i32 = arith.constant 240 : i32
    %120 = tpu.dynamic_rotate %91 by %c240_i32 dim 1 : vector<1x256xf32>, i32 -> vector<1x256xf32>
    %121 = arith.mulf %120, %7 : vector<1x256xf32>
    %c239_i32 = arith.constant 239 : i32
    %122 = tpu.dynamic_rotate %91 by %c239_i32 dim 1 : vector<1x256xf32>, i32 -> vector<1x256xf32>
    %123 = arith.mulf %122, %8 : vector<1x256xf32>
    %c17_i32_125 = arith.constant 17 : i32
    %124 = tpu.dynamic_rotate %106 by %c17_i32_125 dim 1 : vector<1x256xf32>, i32 -> vector<1x256xf32>
    %125 = arith.mulf %124, %0 : vector<1x256xf32>
    %c16_i32_126 = arith.constant 16 : i32
    %126 = tpu.dynamic_rotate %106 by %c16_i32_126 dim 1 : vector<1x256xf32>, i32 -> vector<1x256xf32>
    %127 = arith.mulf %126, %1 : vector<1x256xf32>
    %c15_i32_127 = arith.constant 15 : i32
    %128 = tpu.dynamic_rotate %106 by %c15_i32_127 dim 1 : vector<1x256xf32>, i32 -> vector<1x256xf32>
    %129 = arith.mulf %128, %2 : vector<1x256xf32>
    %c1_i32_128 = arith.constant 1 : i32
    %130 = tpu.dynamic_rotate %106 by %c1_i32_128 dim 1 : vector<1x256xf32>, i32 -> vector<1x256xf32>
    %131 = arith.mulf %130, %3 : vector<1x256xf32>
    %132 = arith.mulf %106, %4 : vector<1x256xf32>
    %c255_i32_129 = arith.constant 255 : i32
    %133 = tpu.dynamic_rotate %106 by %c255_i32_129 dim 1 : vector<1x256xf32>, i32 -> vector<1x256xf32>
    %134 = arith.mulf %133, %5 : vector<1x256xf32>
    %c241_i32_130 = arith.constant 241 : i32
    %135 = tpu.dynamic_rotate %106 by %c241_i32_130 dim 1 : vector<1x256xf32>, i32 -> vector<1x256xf32>
    %136 = arith.mulf %135, %6 : vector<1x256xf32>
    %c240_i32_131 = arith.constant 240 : i32
    %137 = tpu.dynamic_rotate %106 by %c240_i32_131 dim 1 : vector<1x256xf32>, i32 -> vector<1x256xf32>
    %138 = arith.mulf %137, %7 : vector<1x256xf32>
    %c239_i32_132 = arith.constant 239 : i32
    %139 = tpu.dynamic_rotate %106 by %c239_i32_132 dim 1 : vector<1x256xf32>, i32 -> vector<1x256xf32>
    %140 = arith.mulf %139, %8 : vector<1x256xf32>
    %141 = vector.broadcast %19 : f32 to vector<1x256xf32>
    %142 = arith.mulf %141, %108 : vector<1x256xf32>
    %143 = vector.broadcast %20 : f32 to vector<1x256xf32>
    %144 = arith.mulf %143, %110 : vector<1x256xf32>
    %145 = arith.addf %142, %144 : vector<1x256xf32>
    %146 = vector.broadcast %21 : f32 to vector<1x256xf32>
    %147 = arith.mulf %146, %112 : vector<1x256xf32>
    %148 = arith.addf %145, %147 : vector<1x256xf32>
    %149 = vector.broadcast %22 : f32 to vector<1x256xf32>
    %150 = arith.mulf %149, %114 : vector<1x256xf32>
    %151 = arith.addf %148, %150 : vector<1x256xf32>
    %152 = vector.broadcast %23 : f32 to vector<1x256xf32>
    %153 = arith.mulf %152, %115 : vector<1x256xf32>
    %154 = arith.addf %151, %153 : vector<1x256xf32>
    %155 = vector.broadcast %24 : f32 to vector<1x256xf32>
    %156 = arith.mulf %155, %117 : vector<1x256xf32>
    %157 = arith.addf %154, %156 : vector<1x256xf32>
    %158 = vector.broadcast %25 : f32 to vector<1x256xf32>
    %159 = arith.mulf %158, %119 : vector<1x256xf32>
    %160 = arith.addf %157, %159 : vector<1x256xf32>
    %161 = vector.broadcast %26 : f32 to vector<1x256xf32>
    %162 = arith.mulf %161, %121 : vector<1x256xf32>
    %163 = arith.addf %160, %162 : vector<1x256xf32>
    %164 = vector.broadcast %27 : f32 to vector<1x256xf32>
    %165 = arith.mulf %164, %123 : vector<1x256xf32>
    %166 = arith.addf %163, %165 : vector<1x256xf32>
    %167 = vector.broadcast %28 : f32 to vector<1x256xf32>
    %168 = arith.mulf %167, %125 : vector<1x256xf32>
    %169 = arith.addf %166, %168 : vector<1x256xf32>
    %170 = vector.broadcast %29 : f32 to vector<1x256xf32>
    %171 = arith.mulf %170, %127 : vector<1x256xf32>
    %172 = arith.addf %169, %171 : vector<1x256xf32>
    %173 = vector.broadcast %30 : f32 to vector<1x256xf32>
    %174 = arith.mulf %173, %129 : vector<1x256xf32>
    %175 = arith.addf %172, %174 : vector<1x256xf32>
    %176 = vector.broadcast %31 : f32 to vector<1x256xf32>
    %177 = arith.mulf %176, %131 : vector<1x256xf32>
    %178 = arith.addf %175, %177 : vector<1x256xf32>
    %179 = vector.broadcast %32 : f32 to vector<1x256xf32>
    %180 = arith.mulf %179, %132 : vector<1x256xf32>
    %181 = arith.addf %178, %180 : vector<1x256xf32>
    %182 = vector.broadcast %33 : f32 to vector<1x256xf32>
    %183 = arith.mulf %182, %134 : vector<1x256xf32>
    %184 = arith.addf %181, %183 : vector<1x256xf32>
    %185 = vector.broadcast %34 : f32 to vector<1x256xf32>
    %186 = arith.mulf %185, %136 : vector<1x256xf32>
    %187 = arith.addf %184, %186 : vector<1x256xf32>
    %188 = vector.broadcast %35 : f32 to vector<1x256xf32>
    %189 = arith.mulf %188, %138 : vector<1x256xf32>
    %190 = arith.addf %187, %189 : vector<1x256xf32>
    %191 = vector.broadcast %36 : f32 to vector<1x256xf32>
    %192 = arith.mulf %191, %140 : vector<1x256xf32>
    %193 = arith.addf %190, %192 : vector<1x256xf32>
    %194 = vector.broadcast %55 : f32 to vector<1x256xf32>
    %195 = arith.addf %193, %194 : vector<1x256xf32>
    %cst_133 = arith.constant 0.000000e+00 : f32
    %196 = vector.broadcast %cst_133 : f32 to vector<1x256xf32>
    %197 = arith.maximumf %195, %196 : vector<1x256xf32>
    %198 = vector.broadcast %37 : f32 to vector<1x256xf32>
    %199 = arith.mulf %198, %108 : vector<1x256xf32>
    %200 = vector.broadcast %38 : f32 to vector<1x256xf32>
    %201 = arith.mulf %200, %110 : vector<1x256xf32>
    %202 = arith.addf %199, %201 : vector<1x256xf32>
    %203 = vector.broadcast %39 : f32 to vector<1x256xf32>
    %204 = arith.mulf %203, %112 : vector<1x256xf32>
    %205 = arith.addf %202, %204 : vector<1x256xf32>
    %206 = vector.broadcast %40 : f32 to vector<1x256xf32>
    %207 = arith.mulf %206, %114 : vector<1x256xf32>
    %208 = arith.addf %205, %207 : vector<1x256xf32>
    %209 = vector.broadcast %41 : f32 to vector<1x256xf32>
    %210 = arith.mulf %209, %115 : vector<1x256xf32>
    %211 = arith.addf %208, %210 : vector<1x256xf32>
    %212 = vector.broadcast %42 : f32 to vector<1x256xf32>
    %213 = arith.mulf %212, %117 : vector<1x256xf32>
    %214 = arith.addf %211, %213 : vector<1x256xf32>
    %215 = vector.broadcast %43 : f32 to vector<1x256xf32>
    %216 = arith.mulf %215, %119 : vector<1x256xf32>
    %217 = arith.addf %214, %216 : vector<1x256xf32>
    %218 = vector.broadcast %44 : f32 to vector<1x256xf32>
    %219 = arith.mulf %218, %121 : vector<1x256xf32>
    %220 = arith.addf %217, %219 : vector<1x256xf32>
    %221 = vector.broadcast %45 : f32 to vector<1x256xf32>
    %222 = arith.mulf %221, %123 : vector<1x256xf32>
    %223 = arith.addf %220, %222 : vector<1x256xf32>
    %224 = vector.broadcast %46 : f32 to vector<1x256xf32>
    %225 = arith.mulf %224, %125 : vector<1x256xf32>
    %226 = arith.addf %223, %225 : vector<1x256xf32>
    %227 = vector.broadcast %47 : f32 to vector<1x256xf32>
    %228 = arith.mulf %227, %127 : vector<1x256xf32>
    %229 = arith.addf %226, %228 : vector<1x256xf32>
    %230 = vector.broadcast %48 : f32 to vector<1x256xf32>
    %231 = arith.mulf %230, %129 : vector<1x256xf32>
    %232 = arith.addf %229, %231 : vector<1x256xf32>
    %233 = vector.broadcast %49 : f32 to vector<1x256xf32>
    %234 = arith.mulf %233, %131 : vector<1x256xf32>
    %235 = arith.addf %232, %234 : vector<1x256xf32>
    %236 = vector.broadcast %50 : f32 to vector<1x256xf32>
    %237 = arith.mulf %236, %132 : vector<1x256xf32>
    %238 = arith.addf %235, %237 : vector<1x256xf32>
    %239 = vector.broadcast %51 : f32 to vector<1x256xf32>
    %240 = arith.mulf %239, %134 : vector<1x256xf32>
    %241 = arith.addf %238, %240 : vector<1x256xf32>
    %242 = vector.broadcast %52 : f32 to vector<1x256xf32>
    %243 = arith.mulf %242, %136 : vector<1x256xf32>
    %244 = arith.addf %241, %243 : vector<1x256xf32>
    %245 = vector.broadcast %53 : f32 to vector<1x256xf32>
    %246 = arith.mulf %245, %138 : vector<1x256xf32>
    %247 = arith.addf %244, %246 : vector<1x256xf32>
    %248 = vector.broadcast %54 : f32 to vector<1x256xf32>
    %249 = arith.mulf %248, %140 : vector<1x256xf32>
    %250 = arith.addf %247, %249 : vector<1x256xf32>
    %251 = vector.broadcast %56 : f32 to vector<1x256xf32>
    %252 = arith.addf %250, %251 : vector<1x256xf32>
    %cst_134 = arith.constant 0.000000e+00 : f32
    %253 = vector.broadcast %cst_134 : f32 to vector<1x256xf32>
    %254 = arith.maximumf %252, %253 : vector<1x256xf32>
    %255 = vector.broadcast %57 : f32 to vector<1x256xf32>
    %256 = arith.mulf %255, %197 : vector<1x256xf32>
    %257 = vector.broadcast %58 : f32 to vector<1x256xf32>
    %258 = arith.mulf %257, %254 : vector<1x256xf32>
    %259 = arith.addf %256, %258 : vector<1x256xf32>
    %260 = vector.broadcast %65 : f32 to vector<1x256xf32>
    %261 = arith.addf %259, %260 : vector<1x256xf32>
    %c0_135 = arith.constant 0 : index
    %c0_136 = arith.constant 0 : index
    %c0_137 = arith.constant 0 : index
    %262 = vector.load %arg9[%c0_135, %c0_136, %c0_137] : memref<1x4x256xf32, #tpu.memory_space<vmem>>, vector<1x1x256xf32>
    %263 = vector.shape_cast %262 : vector<1x1x256xf32> to vector<1x256xf32>
    %264 = vector.shape_cast %261 : vector<1x256xf32> to vector<1x1x256xf32>
    tpu.vector_store %arg9[%c0_135, %c0_136, %c0_137], %264 {strides = array<i32>} : memref<1x4x256xf32, #tpu.memory_space<vmem>>, vector<1x1x256xf32>,
    %265 = vector.broadcast %59 : f32 to vector<1x256xf32>
    %266 = arith.mulf %265, %197 : vector<1x256xf32>
    %267 = vector.broadcast %60 : f32 to vector<1x256xf32>
    %268 = arith.mulf %267, %254 : vector<1x256xf32>
    %269 = arith.addf %266, %268 : vector<1x256xf32>
    %270 = vector.broadcast %66 : f32 to vector<1x256xf32>
    %271 = arith.addf %269, %270 : vector<1x256xf32>
    %c0_138 = arith.constant 0 : index
    %c1_139 = arith.constant 1 : index
    %c0_140 = arith.constant 0 : index
    %272 = vector.load %arg9[%c0_138, %c1_139, %c0_140] : memref<1x4x256xf32, #tpu.memory_space<vmem>>, vector<1x1x256xf32>
    %273 = vector.shape_cast %272 : vector<1x1x256xf32> to vector<1x256xf32>
    %274 = vector.shape_cast %271 : vector<1x256xf32> to vector<1x1x256xf32>
    tpu.vector_store %arg9[%c0_138, %c1_139, %c0_140], %274 {strides = array<i32>} : memref<1x4x256xf32, #tpu.memory_space<vmem>>, vector<1x1x256xf32>,
    %275 = vector.broadcast %61 : f32 to vector<1x256xf32>
    %276 = arith.mulf %275, %197 : vector<1x256xf32>
    %277 = vector.broadcast %62 : f32 to vector<1x256xf32>
    %278 = arith.mulf %277, %254 : vector<1x256xf32>
    %279 = arith.addf %276, %278 : vector<1x256xf32>
    %280 = vector.broadcast %67 : f32 to vector<1x256xf32>
    %281 = arith.addf %279, %280 : vector<1x256xf32>
    %c0_141 = arith.constant 0 : index
    %c2_142 = arith.constant 2 : index
    %c0_143 = arith.constant 0 : index
    %282 = vector.load %arg9[%c0_141, %c2_142, %c0_143] : memref<1x4x256xf32, #tpu.memory_space<vmem>>, vector<1x1x256xf32>
    %283 = vector.shape_cast %282 : vector<1x1x256xf32> to vector<1x256xf32>
    %284 = vector.shape_cast %281 : vector<1x256xf32> to vector<1x1x256xf32>
    tpu.vector_store %arg9[%c0_141, %c2_142, %c0_143], %284 {strides = array<i32>} : memref<1x4x256xf32, #tpu.memory_space<vmem>>, vector<1x1x256xf32>,
    %285 = vector.broadcast %63 : f32 to vector<1x256xf32>
    %286 = arith.mulf %285, %197 : vector<1x256xf32>
    %287 = vector.broadcast %64 : f32 to vector<1x256xf32>
    %288 = arith.mulf %287, %254 : vector<1x256xf32>
    %289 = arith.addf %286, %288 : vector<1x256xf32>
    %290 = vector.broadcast %68 : f32 to vector<1x256xf32>
    %291 = arith.addf %289, %290 : vector<1x256xf32>
    %c0_144 = arith.constant 0 : index
    %c3_145 = arith.constant 3 : index
    %c0_146 = arith.constant 0 : index
    %292 = vector.load %arg9[%c0_144, %c3_145, %c0_146] : memref<1x4x256xf32, #tpu.memory_space<vmem>>, vector<1x1x256xf32>
    %293 = vector.shape_cast %292 : vector<1x1x256xf32> to vector<1x256xf32>
    %294 = vector.shape_cast %291 : vector<1x256xf32> to vector<1x1x256xf32>
    tpu.vector_store %arg9[%c0_144, %c3_145, %c0_146], %294 {strides = array<i32>} : memref<1x4x256xf32, #tpu.memory_space<vmem>>, vector<1x1x256xf32>,
    return
  }
  func.func @transform_0(%arg0: i32) -> (i32, i32, i32) {
    %c0_i32 = arith.constant 0 : i32
    %c0_i32_0 = arith.constant 0 : i32
    %c0_i32_1 = arith.constant 0 : i32
    return %arg0, %c0_i32, %c0_i32_0 : i32, i32, i32
  }
  func.func @transform_1(%arg0: i32) -> (i32, i32) {
    %c0_i32 = arith.constant 0 : i32
    %c0_i32_0 = arith.constant 0 : i32
    %c0_i32_1 = arith.constant 0 : i32
    return %c0_i32, %c0_i32_0 : i32, i32
  }
  func.func @transform_2(%arg0: i32) -> (i32, i32) {
    %c0_i32 = arith.constant 0 : i32
    %c0_i32_0 = arith.constant 0 : i32
    %c0_i32_1 = arith.constant 0 : i32
    return %c0_i32, %c0_i32_0 : i32, i32
  }
  func.func @transform_3(%arg0: i32) -> i32 {
    %c0_i32 = arith.constant 0 : i32
    %c0_i32_0 = arith.constant 0 : i32
    return %c0_i32 : i32
  }
  func.func @transform_4(%arg0: i32) -> (i32, i32) {
    %c0_i32 = arith.constant 0 : i32
    %c0_i32_0 = arith.constant 0 : i32
    %c0_i32_1 = arith.constant 0 : i32
    return %c0_i32, %c0_i32_0 : i32, i32
  }
  func.func @transform_5(%arg0: i32) -> i32 {
    %c0_i32 = arith.constant 0 : i32
    %c0_i32_0 = arith.constant 0 : i32
    return %c0_i32 : i32
  }
  func.func @transform_6(%arg0: i32) -> (i32, i32) {
    %c0_i32 = arith.constant 0 : i32
    %c0_i32_0 = arith.constant 0 : i32
    %c0_i32_1 = arith.constant 0 : i32
    return %c0_i32, %c0_i32_0 : i32, i32
  }
  func.func @transform_7(%arg0: i32) -> i32 {
    %c0_i32 = arith.constant 0 : i32
    %c0_i32_0 = arith.constant 0 : i32
    return %c0_i32 : i32
  }
  func.func @transform_8(%arg0: i32) -> (i32, i32, i32) {
    %c0_i32 = arith.constant 0 : i32
    %c0_i32_0 = arith.constant 0 : i32
    %c0_i32_1 = arith.constant 0 : i32
    return %arg0, %c0_i32, %c0_i32_0 : i32, i32, i32
  }
}

</mosaic_0001>

<llo_original>
// kernel: tpu_custom_call.1
$region0: #{tpu_custom_call.1}
  #allocation0 [shape = 'u32[]', space=smem, size = 0x4, offset = 0x4, fixed_abs, tag = 'smem constant byte address 0x4 - core index']
  #allocation1 [shape = 'u32[144,128]{1,0:T(1,128)}', space=vmem, size = 0x12000, scoped, tag = 'internal scratch']
  %s0 = inlined_call_operand.hbm [shape: f32[2,4,256], index: 0, kind: input, shape index: {}]
  %s1 = inlined_call_operand.hbm [shape: f32[9,256], index: 1, kind: input, shape index: {}]
  %s2 = inlined_call_operand.vmem [shape: f32[2,4], index: 2, kind: input, shape index: {}]
  %s3 = inlined_call_operand.vmem [shape: f32[2], index: 3, kind: input, shape index: {}]
  %s4 = inlined_call_operand.vmem [shape: f32[2,18], index: 4, kind: input, shape index: {}]
  %s5 = inlined_call_operand.vmem [shape: f32[2], index: 5, kind: input, shape index: {}]
  %s6 = inlined_call_operand.vmem [shape: f32[4,2], index: 6, kind: input, shape index: {}]
  %s7 = inlined_call_operand.vmem [shape: f32[4], index: 7, kind: input, shape index: {}]
  %s8 = inlined_call_operand.hbm [shape: f32[2,4,256], index: 8, kind: output, shape index: {}]
  %s9 = sld [smem:[#allocation0]]
  $region97: #{tpu_custom_call.1} parent=0
    _
  %s11 = ssub.s32 1, %s9
  %s12 = scalar_select 0, %s11, %s9
  $region1: #{tpu_custom_call.1} parent=0
    #allocation2 [shape = 'u8[8192]{0}', space=vmem, size = 0x2000, scoped, tag = 'input window, operand 0']
    #allocation3 [shape = 's32[2]{0}', space=sflag, size = 0x8, scoped, tag = 'scoped memory for tpu_custom_call.1']
    #allocation4 [shape = 's32[2]{0}', space=sflag, size = 0x8, scoped, tag = 'scoped memory for tpu_custom_call.1']
    #allocation5 [shape = 's32[2]{0}', space=sflag, size = 0x8, scoped, tag = 'scoped memory for tpu_custom_call.1']
    #allocation6 [shape = 'u8[16384]{0}', space=vmem, size = 0x4000, scoped, tag = 'input window, operand 1, single buffered']
    #allocation7 [shape = 's32[1]{0}', space=sflag, size = 0x4, scoped, tag = 'scoped memory for tpu_custom_call.1']
    #allocation8 [shape = 'u8[1024]{0}', space=smem, size = 0x400, scoped, tag = 'input window, operand 2, single buffered']
    #allocation9 [shape = 'u8[512]{0}', space=smem, size = 0x200, scoped, tag = 'input window, operand 3, single buffered']
    #allocation10 [shape = 's32[1]{0}', space=sflag, size = 0x4, scoped, tag = 'scoped memory for tpu_custom_call.1']
    #allocation11 [shape = 'u8[1024]{0}', space=smem, size = 0x400, scoped, tag = 'input window, operand 4, single buffered']
    #allocation12 [shape = 'u8[512]{0}', space=smem, size = 0x200, scoped, tag = 'input window, operand 5, single buffered']
    #allocation13 [shape = 's32[1]{0}', space=sflag, size = 0x4, scoped, tag = 'scoped memory for tpu_custom_call.1']
    #allocation14 [shape = 'u8[2048]{0}', space=smem, size = 0x800, scoped, tag = 'input window, operand 6, single buffered']
    #allocation15 [shape = 'u8[512]{0}', space=smem, size = 0x200, scoped, tag = 'input window, operand 7, single buffered']
    #allocation16 [shape = 's32[1]{0}', space=sflag, size = 0x4, scoped, tag = 'scoped memory for tpu_custom_call.1']
    #allocation17 [shape = 'u8[8192]{0}', space=vmem, size = 0x2000, scoped, tag = 'output window, operand 0']
    %13 = vsyncpa [#allocation3], 0
    %s14 = scalar_lea.sflag [#allocation3], 1
    %15 = vsyncpa %s14, 0
    %16 = vsyncpa [#allocation7], 0
    %17 = vsyncpa [#allocation5], 0
    %18 = vsyncpa [#allocation10], 0
    %19 = vsyncpa [#allocation13], 0
    %20 = vsyncpa [#allocation16], 0
    %21 = vsyncpa [#allocation4], 0
    %s22 = scalar_lea.sflag [#allocation4], 1
    %23 = vsyncpa %s22, 0
    loop: start=0, step=1, limit=4
    $region2: #{tpu_custom_call.1} parent=1 // loop_pre_header
      _
    $region3: #{tpu_custom_call.1} parent=1 // loop_header
      %s25 = sphi 0, %s29
      %p26 = scmp.ge.s32.totalorder %s25, 4
      %s35 = sphi 0, %s37
      %s38 = sphi 0, %s35
      %s39 = sphi 0, %s38
      %s55 = sphi 0, %s39
      %s59 = sphi 0, %s59
      %s61 = sphi 0, %s59
      %s62 = sphi 0, %s61
      %s76 = sphi 0, %s62
      %s80 = sphi 0, %s80
      %s82 = sphi 0, %s80
      %s83 = sphi 0, %s82
      %s97 = sphi 0, %s83
      %s101 = sphi 0, %s101
      %s103 = sphi 0, %s101
      %s104 = sphi 0, %s103
      %s118 = sphi 0, %s104
      %s122 = sphi 0, %s122
      %s124 = sphi 0, %s122
      %s125 = sphi 0, %s124
      %s139 = sphi 0, %s125
      %s143 = sphi 0, %s143
      %s145 = sphi 0, %s143
      %s146 = sphi 0, %s145
      %s160 = sphi 0, %s146
      %s164 = sphi 0, %s164
      %s166 = sphi 0, %s164
      %s167 = sphi 0, %s166
      %s181 = sphi 0, %s167
      %s185 = sphi 0, %s185
      %s187 = sphi 0, %s185
      %s188 = sphi 0, %s187
      %s202 = sphi 0, %s188
      %s208 = sphi 0, %s210
      %s211 = sphi 0, %s208
      %s212 = sphi 0, %s211
      %s228 = sphi 0, %s212
    $region4: #{tpu_custom_call.1} parent=1 // loop_header_branch
      %28 = sbr.rel (%p26) target = $region8
    $region5: #{tpu_custom_call.1} parent=1 // loop_body
      %s30 = ssub.s32 %s25, 1
      %s31 = ssub.s32 %s25, 2
      %s32 = sadd.s32 %s25, 1
      %s33 = ssub.s32 %s25, %s32
      %p34 = scmp.eq.s32.totalorder %s33, 0
      %s36 = sadd.s32 %s35, 1
      %s37 = scalar_select %p34, %s35, %s36
      %p40 = pneg %p34
      %p41 = scmp.eq.s32.totalorder %s25, 1
      %p42 = por %p40, %p41
      %p43 = scmp.ne.s32.totalorder %s35, %s38
      %p44 = scmp.eq.s32.totalorder %s25, 0
      %p45 = por %p43, %p44
      %p46 = scmp.ne.s32.totalorder %s35, %s38
      %p47 = scmp.eq.s32.totalorder %s30, 1
      %p48 = por %p46, %p47
      %p49 = scmp.ne.s32.totalorder %s38, %s39
      %p50 = scmp.eq.s32.totalorder %s30, 0
      %p51 = por %p49, %p50
      %p52 = scmp.ne.s32.totalorder %s38, %s39
      %p53 = scmp.eq.s32.totalorder %s31, 1
      %p54 = por %p52, %p53
      %p56 = scmp.ne.s32.totalorder %s39, %s55
      %p57 = scmp.eq.s32.totalorder %s31, 0
      %p58 = por %p56, %p57
      %s60 = sadd.s32 %s59, 1
      %p63 = scmp.eq.s32.totalorder %s25, 1
      %p64 = scmp.ne.s32.totalorder %s59, %s61
      %p65 = scmp.eq.s32.totalorder %s25, 0
      %p66 = por %p64, %p65
      %p67 = scmp.ne.s32.totalorder %s59, %s61
      %p68 = scmp.eq.s32.totalorder %s30, 1
      %p69 = por %p67, %p68
      %p70 = scmp.ne.s32.totalorder %s61, %s62
      %p71 = scmp.eq.s32.totalorder %s30, 0
      %p72 = por %p70, %p71
      %p73 = scmp.ne.s32.totalorder %s61, %s62
      %p74 = scmp.eq.s32.totalorder %s31, 1
      %p75 = por %p73, %p74
      %p77 = scmp.ne.s32.totalorder %s62, %s76
      %p78 = scmp.eq.s32.totalorder %s31, 0
      %p79 = por %p77, %p78
      %s81 = sadd.s32 %s80, 1
      %p84 = scmp.eq.s32.totalorder %s25, 1
      %p85 = scmp.ne.s32.totalorder %s80, %s82
      %p86 = scmp.eq.s32.totalorder %s25, 0
      %p87 = por %p85, %p86
      %p88 = scmp.ne.s32.totalorder %s80, %s82
      %p89 = scmp.eq.s32.totalorder %s30, 1
      %p90 = por %p88, %p89
      %p91 = scmp.ne.s32.totalorder %s82, %s83
      %p92 = scmp.eq.s32.totalorder %s30, 0
      %p93 = por %p91, %p92
      %p94 = scmp.ne.s32.totalorder %s82, %s83
      %p95 = scmp.eq.s32.totalorder %s31, 1
      %p96 = por %p94, %p95
      %p98 = scmp.ne.s32.totalorder %s83, %s97
      %p99 = scmp.eq.s32.totalorder %s31, 0
      %p100 = por %p98, %p99
      %s102 = sadd.s32 %s101, 1
      %p105 = scmp.eq.s32.totalorder %s25, 1
      %p106 = scmp.ne.s32.totalorder %s101, %s103
      %p107 = scmp.eq.s32.totalorder %s25, 0
      %p108 = por %p106, %p107
      %p109 = scmp.ne.s32.totalorder %s101, %s103
      %p110 = scmp.eq.s32.totalorder %s30, 1
      %p111 = por %p109, %p110
      %p112 = scmp.ne.s32.totalorder %s103, %s104
      %p113 = scmp.eq.s32.totalorder %s30, 0
      %p114 = por %p112, %p113
      %p115 = scmp.ne.s32.totalorder %s103, %s104
      %p116 = scmp.eq.s32.totalorder %s31, 1
      %p117 = por %p115, %p116
      %p119 = scmp.ne.s32.totalorder %s104, %s118
      %p120 = scmp.eq.s32.totalorder %s31, 0
      %p121 = por %p119, %p120
      %s123 = sadd.s32 %s122, 1
      %p126 = scmp.eq.s32.totalorder %s25, 1
      %p127 = scmp.ne.s32.totalorder %s122, %s124
      %p128 = scmp.eq.s32.totalorder %s25, 0
      %p129 = por %p127, %p128
      %p130 = scmp.ne.s32.totalorder %s122, %s124
      %p131 = scmp.eq.s32.totalorder %s30, 1
      %p132 = por %p130, %p131
      %p133 = scmp.ne.s32.totalorder %s124, %s125
      %p134 = scmp.eq.s32.totalorder %s30, 0
      %p135 = por %p133, %p134
      %p136 = scmp.ne.s32.totalorder %s124, %s125
      %p137 = scmp.eq.s32.totalorder %s31, 1
      %p138 = por %p136, %p137
      %p140 = scmp.ne.s32.totalorder %s125, %s139
      %p141 = scmp.eq.s32.totalorder %s31, 0
      %p142 = por %p140, %p141
      %s144 = sadd.s32 %s143, 1
      %p147 = scmp.eq.s32.totalorder %s25, 1
      %p148 = scmp.ne.s32.totalorder %s143, %s145
      %p149 = scmp.eq.s32.totalorder %s25, 0
      %p150 = por %p148, %p149
      %p151 = scmp.ne.s32.totalorder %s143, %s145
      %p152 = scmp.eq.s32.totalorder %s30, 1
      %p153 = por %p151, %p152
      %p154 = scmp.ne.s32.totalorder %s145, %s146
      %p155 = scmp.eq.s32.totalorder %s30, 0
      %p156 = por %p154, %p155
      %p157 = scmp.ne.s32.totalorder %s145, %s146
      %p158 = scmp.eq.s32.totalorder %s31, 1
      %p159 = por %p157, %p158
      %p161 = scmp.ne.s32.totalorder %s146, %s160
      %p162 = scmp.eq.s32.totalorder %s31, 0
      %p163 = por %p161, %p162
      %s165 = sadd.s32 %s164, 1
      %p168 = scmp.eq.s32.totalorder %s25, 1
      %p169 = scmp.ne.s32.totalorder %s164, %s166
      %p170 = scmp.eq.s32.totalorder %s25, 0
      %p171 = por %p169, %p170
      %p172 = scmp.ne.s32.totalorder %s164, %s166
      %p173 = scmp.eq.s32.totalorder %s30, 1
      %p174 = por %p172, %p173
      %p175 = scmp.ne.s32.totalorder %s166, %s167
      %p176 = scmp.eq.s32.totalorder %s30, 0
      %p177 = por %p175, %p176
      %p178 = scmp.ne.s32.totalorder %s166, %s167
      %p179 = scmp.eq.s32.totalorder %s31, 1
      %p180 = por %p178, %p179
      %p182 = scmp.ne.s32.totalorder %s167, %s181
      %p183 = scmp.eq.s32.totalorder %s31, 0
      %p184 = por %p182, %p183
      %s186 = sadd.s32 %s185, 1
      %p189 = scmp.eq.s32.totalorder %s25, 1
      %p190 = scmp.ne.s32.totalorder %s185, %s187
      %p191 = scmp.eq.s32.totalorder %s25, 0
      %p192 = por %p190, %p191
      %p193 = scmp.ne.s32.totalorder %s185, %s187
      %p194 = scmp.eq.s32.totalorder %s30, 1
      %p195 = por %p193, %p194
      %p196 = scmp.ne.s32.totalorder %s187, %s188
      %p197 = scmp.eq.s32.totalorder %s30, 0
      %p198 = por %p196, %p197
      %p199 = scmp.ne.s32.totalorder %s187, %s188
      %p200 = scmp.eq.s32.totalorder %s31, 1
      %p201 = por %p199, %p200
      %p203 = scmp.ne.s32.totalorder %s188, %s202
      %p204 = scmp.eq.s32.totalorder %s31, 0
      %p205 = por %p203, %p204
      %s206 = ssub.s32 %s25, %s32
      %p207 = scmp.eq.s32.totalorder %s206, 0
      %s209 = sadd.s32 %s208, 1
      %s210 = scalar_select %p207, %s208, %s209
      %p213 = pneg %p207
      %p214 = scmp.eq.s32.totalorder %s25, 1
      %p215 = por %p213, %p214
      %p216 = scmp.ne.s32.totalorder %s208, %s211
      %p217 = scmp.eq.s32.totalorder %s25, 0
      %p218 = por %p216, %p217
      %p219 = scmp.ne.s32.totalorder %s208, %s211
      %p220 = scmp.eq.s32.totalorder %s30, 1
      %p221 = por %p219, %p220
      %p222 = scmp.ne.s32.totalorder %s211, %s212
      %p223 = scmp.eq.s32.totalorder %s30, 0
      %p224 = por %p222, %p223
      %p225 = scmp.ne.s32.totalorder %s211, %s212
      %p226 = scmp.eq.s32.totalorder %s31, 1
      %p227 = por %p225, %p226
      %p229 = scmp.ne.s32.totalorder %s212, %s228
      %p230 = scmp.eq.s32.totalorder %s31, 0
      %p231 = por %p229, %p230
      %p232 = scmp.le.s32.totalorder 1, %s25
      %p233 = scmp.lt.s32.totalorder %s25, 3
      %p234 = pnand %p232, %p233
      %p235 = pneg %p234
      // Predicated region
      $region9: #{tpu_custom_call.1} parent=5 // pred_check
        _
      $region10: #{tpu_custom_call.1} parent=5 // pred_check_branch
        %237 = sbr.rel (%p234) target = $region12
      $region11: #{tpu_custom_call.1} parent=5 // pred_region
        %s238 = ssub.s32 %s25, 1
        // Predicated region
        $region13: #{tpu_custom_call.1} parent=11 // pred_check
          %p239 = pneg %p72
        $region14: #{tpu_custom_call.1} parent=11 // pred_check_branch
          %241 = sbr.rel (%p239) target = $region16
        $region15: #{tpu_custom_call.1} parent=11 // pred_region
          %s243 = ssub.s32 512, 512
          %244 = vsyncadd [#allocation7], %s243
          %s245 = sshll.u32 [#allocation6], 4
          %s246 = int_to_ptr.vmem [resolvable:$true] %s245
          %251 = dma.hbm_to_vmem [thread:$0]  %s1, 512, %s246, [#allocation7], 256, 256, 16
        $region16: #{tpu_custom_call.1} parent=11 // pred_fallthru
          _
        // Predicated region
        $region17: #{tpu_custom_call.1} parent=11 // pred_check
          %p252 = pneg %p93
        $region18: #{tpu_custom_call.1} parent=11 // pred_check_branch
          %254 = sbr.rel (%p252) target = $region20
        $region19: #{tpu_custom_call.1} parent=11 // pred_region
          %s256 = ssub.s32 32, 32
          %257 = vsyncadd [#allocation5], %s256
          %s259 = sshll.u32 %s2, 4
          %s260 = int_to_ptr.vmem [resolvable:$true] %s259
          %262 = dma.vmem_to_smem %s260, 32, [#allocation8], [#allocation5]
        $region20: #{tpu_custom_call.1} parent=11 // pred_fallthru
          _
        // Predicated region
        $region21: #{tpu_custom_call.1} parent=11 // pred_check
          %p263 = pneg %p114
        $region22: #{tpu_custom_call.1} parent=11 // pred_check_branch
          %265 = sbr.rel (%p263) target = $region24
        $region23: #{tpu_custom_call.1} parent=11 // pred_region
          %s267 = ssub.s32 16, 16
          %268 = vsyncadd [#allocation10], %s267
          %s270 = sshll.u32 %s3, 4
          %s271 = int_to_ptr.vmem [resolvable:$true] %s270
          %273 = dma.vmem_to_smem %s271, 16, [#allocation9], [#allocation10]
        $region24: #{tpu_custom_call.1} parent=11 // pred_fallthru
          _
        // Predicated region
        $region25: #{tpu_custom_call.1} parent=11 // pred_check
          %p274 = pneg %p135
        $region26: #{tpu_custom_call.1} parent=11 // pred_check_branch
          %276 = sbr.rel (%p274) target = $region28
        $region27: #{tpu_custom_call.1} parent=11 // pred_region
          %s278 = ssub.s32 32, 32
          %279 = vsyncadd [#allocation10], %s278
          %s281 = sshll.u32 %s4, 4
          %s282 = int_to_ptr.vmem [resolvable:$true] %s281
          %284 = dma.vmem_to_smem %s282, 32, [#allocation11], [#allocation10]
        $region28: #{tpu_custom_call.1} parent=11 // pred_fallthru
          _
        // Predicated region
        $region29: #{tpu_custom_call.1} parent=11 // pred_check
          %p285 = pneg %p156
        $region30: #{tpu_custom_call.1} parent=11 // pred_check_branch
          %287 = sbr.rel (%p285) target = $region32
        $region31: #{tpu_custom_call.1} parent=11 // pred_region
          %s289 = ssub.s32 16, 16
          %290 = vsyncadd [#allocation13], %s289
          %s292 = sshll.u32 %s5, 4
          %s293 = int_to_ptr.vmem [resolvable:$true] %s292
          %295 = dma.vmem_to_smem %s293, 16, [#allocation12], [#allocation13]
        $region32: #{tpu_custom_call.1} parent=11 // pred_fallthru
          _
        // Predicated region
        $region33: #{tpu_custom_call.1} parent=11 // pred_check
          %p296 = pneg %p177
        $region34: #{tpu_custom_call.1} parent=11 // pred_check_branch
          %298 = sbr.rel (%p296) target = $region36
        $region35: #{tpu_custom_call.1} parent=11 // pred_region
          %s300 = ssub.s32 64, 64
          %301 = vsyncadd [#allocation13], %s300
          %s303 = sshll.u32 %s6, 4
          %s304 = int_to_ptr.vmem [resolvable:$true] %s303
          %306 = dma.vmem_to_smem %s304, 64, [#allocation14], [#allocation13]
        $region36: #{tpu_custom_call.1} parent=11 // pred_fallthru
          _
        // Predicated region
        $region37: #{tpu_custom_call.1} parent=11 // pred_check
          %p307 = pneg %p198
        $region38: #{tpu_custom_call.1} parent=11 // pred_check_branch
          %309 = sbr.rel (%p307) target = $region40
        $region39: #{tpu_custom_call.1} parent=11 // pred_region
          %s311 = ssub.s32 16, 16
          %312 = vsyncadd [#allocation16], %s311
          %s314 = sshll.u32 %s7, 4
          %s315 = int_to_ptr.vmem [resolvable:$true] %s314
          %317 = dma.vmem_to_smem %s315, 16, [#allocation15], [#allocation16]
        $region40: #{tpu_custom_call.1} parent=11 // pred_fallthru
          _
      $region12: #{tpu_custom_call.1} parent=5 // pred_fallthru
        _
      %p318 = scmp.lt.s32.totalorder %s25, 2
      // Predicated region
      $region41: #{tpu_custom_call.1} parent=5 // pred_check
        %p319 = pneg %p318
      $region42: #{tpu_custom_call.1} parent=5 // pred_check_branch
        %321 = sbr.rel (%p319) target = $region44
      $region43: #{tpu_custom_call.1} parent=5 // pred_region
        // Predicated region
        $region45: #{tpu_custom_call.1} parent=43 // pred_check
          %p322 = pneg %p45
        $region46: #{tpu_custom_call.1} parent=43 // pred_check_branch
          %324 = sbr.rel (%p322) target = $region48
        $region47: #{tpu_custom_call.1} parent=43 // pred_region
          %s325 = sand.u32 %s35, 1
          %s326 = scalar_lea.sflag [#allocation3], %s325
          %s327 = sand.u32 %s35, 1
          %s328 = smul.addr %s327, 8
          %s329 = scalar_lea.vmem [#allocation2], %s328
          %s331 = ssub.s32 128, 128
          %332 = vsyncadd %s326, %s331
          %s333 = smul.addr %s25, 2
          %s334 = smul.addr %s333, 64
          %s335 = scalar_lea.hbm %s0, %s334
          %s337 = sshll.u32 %s329, 4
          %s338 = int_to_ptr.vmem [resolvable:$true] %s337
          %340 = dma.hbm_to_vmem [thread:$0]  %s335, 128, %s338, %s326
        $region48: #{tpu_custom_call.1} parent=43 // pred_fallthru
          _
      $region44: #{tpu_custom_call.1} parent=5 // pred_fallthru
        _
      %p341 = scmp.le.s32.totalorder 1, %s25
      %p342 = scmp.lt.s32.totalorder %s25, 3
      %p343 = pnand %p341, %p342
      %p344 = pneg %p343
      // Predicated region
      $region49: #{tpu_custom_call.1} parent=5 // pred_check
        _
      $region50: #{tpu_custom_call.1} parent=5 // pred_check_branch
        %346 = sbr.rel (%p343) target = $region52
      $region51: #{tpu_custom_call.1} parent=5 // pred_region
        %s347 = ssub.s32 %s25, 1
        %s348 = sand.u32 %s38, 1
        %s349 = scalar_lea.sflag [#allocation3], %s348
        %s350 = sand.u32 %s38, 1
        %s351 = smul.addr %s350, 8
        %s352 = scalar_lea.vmem [#allocation2], %s351
        // Predicated region
        $region53: #{tpu_custom_call.1} parent=51 // pred_check
          %p353 = pneg %p51
        $region54: #{tpu_custom_call.1} parent=51 // pred_check_branch
          %355 = sbr.rel (%p353) target = $region56
        $region55: #{tpu_custom_call.1} parent=51 // pred_region
          %356 = dma.done %s349, 128
        $region56: #{tpu_custom_call.1} parent=51 // pred_fallthru
          _
        // Predicated region
        $region57: #{tpu_custom_call.1} parent=51 // pred_check
          %p357 = pneg %p72
        $region58: #{tpu_custom_call.1} parent=51 // pred_check_branch
          %359 = sbr.rel (%p357) target = $region60
        $region59: #{tpu_custom_call.1} parent=51 // pred_region
          %360 = dma.done [#allocation7], 512
        $region60: #{tpu_custom_call.1} parent=51 // pred_fallthru
          _
        // Predicated region
        $region61: #{tpu_custom_call.1} parent=51 // pred_check
          %p361 = pneg %p93
        $region62: #{tpu_custom_call.1} parent=51 // pred_check_branch
          %363 = sbr.rel (%p361) target = $region64
        $region63: #{tpu_custom_call.1} parent=51 // pred_region
          %364 = dma.done [#allocation5], 32
        $region64: #{tpu_custom_call.1} parent=51 // pred_fallthru
          _
        // Predicated region
        $region65: #{tpu_custom_call.1} parent=51 // pred_check
          %p365 = pneg %p114
        $region66: #{tpu_custom_call.1} parent=51 // pred_check_branch
          %367 = sbr.rel (%p365) target = $region68
        $region67: #{tpu_custom_call.1} parent=51 // pred_region
          %368 = dma.done [#allocation10], 16
        $region68: #{tpu_custom_call.1} parent=51 // pred_fallthru
          _
        // Predicated region
        $region69: #{tpu_custom_call.1} parent=51 // pred_check
          %p369 = pneg %p135
        $region70: #{tpu_custom_call.1} parent=51 // pred_check_branch
          %371 = sbr.rel (%p369) target = $region72
        $region71: #{tpu_custom_call.1} parent=51 // pred_region
          %372 = dma.done [#allocation10], 32
        $region72: #{tpu_custom_call.1} parent=51 // pred_fallthru
          _
        // Predicated region
        $region73: #{tpu_custom_call.1} parent=51 // pred_check
          %p373 = pneg %p156
        $region74: #{tpu_custom_call.1} parent=51 // pred_check_branch
          %375 = sbr.rel (%p373) target = $region76
        $region75: #{tpu_custom_call.1} parent=51 // pred_region
          %376 = dma.done [#allocation13], 16
        $region76: #{tpu_custom_call.1} parent=51 // pred_fallthru
          _
        // Predicated region
        $region77: #{tpu_custom_call.1} parent=51 // pred_check
          %p377 = pneg %p177
        $region78: #{tpu_custom_call.1} parent=51 // pred_check_branch
          %379 = sbr.rel (%p377) target = $region80
        $region79: #{tpu_custom_call.1} parent=51 // pred_region
          %380 = dma.done [#allocation13], 64
        $region80: #{tpu_custom_call.1} parent=51 // pred_fallthru
          _
        // Predicated region
        $region81: #{tpu_custom_call.1} parent=51 // pred_check
          %p381 = pneg %p198
        $region82: #{tpu_custom_call.1} parent=51 // pred_check_branch
          %383 = sbr.rel (%p381) target = $region84
        $region83: #{tpu_custom_call.1} parent=51 // pred_region
          %384 = dma.done [#allocation16], 16
        $region84: #{tpu_custom_call.1} parent=51 // pred_fallthru
          _
        %385 = sfence
        %s386 = sand.u32 %s38, 1
        %s387 = scalar_lea.sflag [#allocation3], %s386
        %s388 = sand.u32 %s38, 1
        %s389 = smul.addr %s388, 8
        %s390 = scalar_lea.vmem [#allocation2], %s389
        %p391 = pneg %p51
        %p392 = pneg %p48
        %p393 = pneg %p72
        %p394 = pneg %p69
        %p395 = pneg %p93
        %p396 = pneg %p90
        %p397 = pneg %p114
        %p398 = pneg %p111
        %p399 = pneg %p135
        %p400 = pneg %p132
        %p401 = pneg %p156
        %p402 = pneg %p153
        %p403 = pneg %p177
        %p404 = pneg %p174
        %p405 = pneg %p198
        %p406 = pneg %p195
        %p407 = pneg %p224
        %p408 = pneg %p221
        %s409 = sand.u32 %s211, 1
        %s410 = scalar_lea.sflag [#allocation4], %s409
        %s411 = sand.u32 %s211, 1
        %s412 = smul.addr %s411, 8
        %s413 = scalar_lea.vmem [#allocation17], %s412
        %v414 = vld [vmem:[#allocation6] ss:$8 sm:$0x3]
        %s415 = scalar_lea.vmem [#allocation6], 1
        %v416 = vld [vmem:[%s415] ss:$8 sm:$0x3]
        %s417 = scalar_lea.vmem [#allocation6], 2
        %v418 = vld [vmem:[%s417] ss:$8 sm:$0x3]
        %s419 = scalar_lea.vmem [#allocation6], 3
        %v420 = vld [vmem:[%s419] ss:$8 sm:$0x3]
        %s421 = scalar_lea.vmem [#allocation6], 4
        %v422 = vld [vmem:[%s421] ss:$8 sm:$0x3]
        %s423 = scalar_lea.vmem [#allocation6], 5
        %v424 = vld [vmem:[%s423] ss:$8 sm:$0x3]
        %s425 = scalar_lea.vmem [#allocation6], 6
        %v426 = vld [vmem:[%s425] ss:$8 sm:$0x3]
        %s427 = scalar_lea.vmem [#allocation6], 7
        %v428 = vld [vmem:[%s427] ss:$8 sm:$0x3]
        %s429 = scalar_lea.vmem [#allocation6], 16
        %v430 = vld [vmem:[%s429] ss:$8 sm:$0x3]
        %s431 = sld [smem:[#allocation8]]
        %s432 = sld [smem:[#allocation8 + $0x1]]
        %s433 = sld [smem:[#allocation8 + $0x2]]
        %s434 = sld [smem:[#allocation8 + $0x3]]
        %s435 = sld [smem:[#allocation8 + $0x80]]
        %s436 = sld [smem:[#allocation8 + $0x81]]
        %s437 = sld [smem:[#allocation8 + $0x82]]
        %s438 = sld [smem:[#allocation8 + $0x83]]
        %s439 = sld [smem:[#allocation9]]
        %s440 = sld [smem:[#allocation9 + $0x1]]
        %s441 = sld [smem:[#allocation11]]
        %s442 = sld [smem:[#allocation11 + $0x1]]
        %s443 = sld [smem:[#allocation11 + $0x2]]
        %s444 = sld [smem:[#allocation11 + $0x3]]
        %s445 = sld [smem:[#allocation11 + $0x4]]
        %s446 = sld [smem:[#allocation11 + $0x5]]
        %s447 = sld [smem:[#allocation11 + $0x6]]
        %s448 = sld [smem:[#allocation11 + $0x7]]
        %s449 = sld [smem:[#allocation11 + $0x8]]
        %s450 = sld [smem:[#allocation11 + $0x9]]
        %s451 = sld [smem:[#allocation11 + $0xa]]
        %s452 = sld [smem:[#allocation11 + $0xb]]
        %s453 = sld [smem:[#allocation11 + $0xc]]
        %s454 = sld [smem:[#allocation11 + $0xd]]
        %s455 = sld [smem:[#allocation11 + $0xe]]
        %s456 = sld [smem:[#allocation11 + $0xf]]
        %s457 = sld [smem:[#allocation11 + $0x10]]
        %s458 = sld [smem:[#allocation11 + $0x11]]
        %s459 = sld [smem:[#allocation11 + $0x80]]
        %s460 = sld [smem:[#allocation11 + $0x81]]
        %s461 = sld [smem:[#allocation11 + $0x82]]
        %s462 = sld [smem:[#allocation11 + $0x83]]
        %s463 = sld [smem:[#allocation11 + $0x84]]
        %s464 = sld [smem:[#allocation11 + $0x85]]
        %s465 = sld [smem:[#allocation11 + $0x86]]
        %s466 = sld [smem:[#allocation11 + $0x87]]
        %s467 = sld [smem:[#allocation11 + $0x88]]
        %s468 = sld [smem:[#allocation11 + $0x89]]
        %s469 = sld [smem:[#allocation11 + $0x8a]]
        %s470 = sld [smem:[#allocation11 + $0x8b]]
        %s471 = sld [smem:[#allocation11 + $0x8c]]
        %s472 = sld [smem:[#allocation11 + $0x8d]]
        %s473 = sld [smem:[#allocation11 + $0x8e]]
        %s474 = sld [smem:[#allocation11 + $0x8f]]
        %s475 = sld [smem:[#allocation11 + $0x90]]
        %s476 = sld [smem:[#allocation11 + $0x91]]
        %s477 = sld [smem:[#allocation12]]
        %s478 = sld [smem:[#allocation12 + $0x1]]
        %s479 = sld [smem:[#allocation14]]
        %s480 = sld [smem:[#allocation14 + $0x1]]
        %s481 = sld [smem:[#allocation14 + $0x80]]
        %s482 = sld [smem:[#allocation14 + $0x81]]
        %s483 = sld [smem:[#allocation14 + $0x100]]
        %s484 = sld [smem:[#allocation14 + $0x101]]
        %s485 = sld [smem:[#allocation14 + $0x180]]
        %s486 = sld [smem:[#allocation14 + $0x181]]
        %s487 = sld [smem:[#allocation15]]
        %s488 = sld [smem:[#allocation15 + $0x1]]
        %s489 = sld [smem:[#allocation15 + $0x2]]
        %s490 = sld [smem:[#allocation15 + $0x3]]
        %v491 = vld [vmem:[%s352] ss:$4 sm:$0x3]
        %s492 = scalar_lea.vmem %s352, 1 [#allocation2]
        %v493 = vld [vmem:[%s492] ss:$4 sm:$0x3]
        %s494 = scalar_lea.vmem %s352, 2 [#allocation2]
        %v495 = vld [vmem:[%s494] ss:$4 sm:$0x3]
        %s496 = scalar_lea.vmem %s352, 3 [#allocation2]
        %v497 = vld [vmem:[%s496] ss:$4 sm:$0x3]
        %v498 = vstv %s431
        %v499 = vmul.f32 %v498, %v491
        %v500 = vstv %s432
        %v501 = vmul.f32 %v500, %v493
        %v502 = vadd.f32 %v499, %v501
        %v503 = vstv %s433
        %v504 = vmul.f32 %v503, %v495
        %v505 = vadd.f32 %v502, %v504
        %v506 = vstv %s434
        %v507 = vmul.f32 %v506, %v497
        %v508 = vadd.f32 %v505, %v507
        %v509 = vstv %s439
        %v510 = vadd.f32 %v508, %v509
        %v511 = vmax.f32 %v510, 0.0
        %v512 = vstv %s435
        %v513 = vmul.f32 %v512, %v491
        %v514 = vstv %s436
        %v515 = vmul.f32 %v514, %v493
        %v516 = vadd.f32 %v513, %v515
        %v517 = vstv %s437
        %v518 = vmul.f32 %v517, %v495
        %v519 = vadd.f32 %v516, %v518
        %v520 = vstv %s438
        %v521 = vmul.f32 %v520, %v497
        %v522 = vadd.f32 %v519, %v521
        %v523 = vstv %s440
        %v524 = vadd.f32 %v522, %v523
        %v525 = vmax.f32 %v524, 0.0
        %v527 = vlaneseq
        %v528 = vshrl.u32 %v527, 7
        %v529 = vsub.s32 0, %v528
        %v530 = vrot.slane %v511, %v529
        %v531 = vlaneseq
        %v532 = vshrl.u32 %v531, 7
        %v533 = vsub.s32 1, %v532
        %v534 = vrot.slane %v511, %v533
        %537 = vrot.lane.b32.xlu0 %v530, 17
        %v538 = vpop.permute.xlu0 %537
        %539 = vrot.lane.b32.xlu0 %v534, 17
        %v540 = vpop.permute.xlu0 %539
        %v541 = vlaneseq
        %v542 = vand.u32 %v541, 127
        %vm543 = vcmp.lt.s32.totalorder %v542, 17
        %v544 = vsel %vm543, %v538, %v540
        %v545 = vsel %vm543, %v540, %v538
        %v547 = vlaneseq
        %v548 = vshrl.u32 %v547, 7
        %v549 = vsub.s32 0, %v548
        %v550 = vrot.slane %v414, %v549
        %v551 = vlaneseq
        %v552 = vshrl.u32 %v551, 7
        %v553 = vsub.s32 1, %v552
        %v554 = vrot.slane %v414, %v553
        %v557 = vmul.f32 %v545, %v550
        %v558 = vmul.f32 %v544, %v554
        %559 = vrot.lane.b32.xlu0 %v530, 16
        %v560 = vpop.permute.xlu0 %559
        %561 = vrot.lane.b32.xlu0 %v534, 16
        %v562 = vpop.permute.xlu0 %561
        %vm563 = vcmp.lt.s32.totalorder %v542, 16
        %v564 = vsel %vm563, %v560, %v562
        %v565 = vsel %vm563, %v562, %v560
        %v567 = vlaneseq
        %v568 = vshrl.u32 %v567, 7
        %v569 = vsub.s32 0, %v568
        %v570 = vrot.slane %v416, %v569
        %v571 = vlaneseq
        %v572 = vshrl.u32 %v571, 7
        %v573 = vsub.s32 1, %v572
        %v574 = vrot.slane %v416, %v573
        %v577 = vmul.f32 %v565, %v570
        %v578 = vmul.f32 %v564, %v574
        %579 = vrot.lane.b32.xlu0 %v530, 15
        %v580 = vpop.permute.xlu0 %579
        %581 = vrot.lane.b32.xlu0 %v534, 15
        %v582 = vpop.permute.xlu0 %581
        %vm583 = vcmp.lt.s32.totalorder %v542, 15
        %v584 = vsel %vm583, %v580, %v582
        %v585 = vsel %vm583, %v582, %v580
        %v587 = vlaneseq
        %v588 = vshrl.u32 %v587, 7
        %v589 = vsub.s32 0, %v588
        %v590 = vrot.slane %v418, %v589
        %v591 = vlaneseq
        %v592 = vshrl.u32 %v591, 7
        %v593 = vsub.s32 1, %v592
        %v594 = vrot.slane %v418, %v593
        %v597 = vmul.f32 %v585, %v590
        %v598 = vmul.f32 %v584, %v594
        %599 = vrot.lane.b32.xlu0 %v530, 1
        %v600 = vpop.permute.xlu0 %599
        %601 = vrot.lane.b32.xlu0 %v534, 1
        %v602 = vpop.permute.xlu0 %601
        %vm603 = vcmp.lt.s32.totalorder %v542, 1
        %v604 = vsel %vm603, %v600, %v602
        %v605 = vsel %vm603, %v602, %v600
        %v607 = vlaneseq
        %v608 = vshrl.u32 %v607, 7
        %v609 = vsub.s32 0, %v608
        %v610 = vrot.slane %v420, %v609
        %v611 = vlaneseq
        %v612 = vshrl.u32 %v611, 7
        %v613 = vsub.s32 1, %v612
        %v614 = vrot.slane %v420, %v613
        %v617 = vmul.f32 %v605, %v610
        %v618 = vmul.f32 %v604, %v614
        %v619 = vmul.f32 %v511, %v422
        %620 = vrot.lane.b32.xlu0 %v530, 127
        %v621 = vpop.permute.xlu0 %620
        %622 = vrot.lane.b32.xlu0 %v534, 127
        %v623 = vpop.permute.xlu0 %622
        %vm624 = vcmp.lt.s32.totalorder %v542, 127
        %v625 = vsel %vm624, %v621, %v623
        %v626 = vsel %vm624, %v623, %v621
        %v628 = vlaneseq
        %v629 = vshrl.u32 %v628, 7
        %v630 = vsub.s32 0, %v629
        %v631 = vrot.slane %v424, %v630
        %v632 = vlaneseq
        %v633 = vshrl.u32 %v632, 7
        %v634 = vsub.s32 1, %v633
        %v635 = vrot.slane %v424, %v634
        %v638 = vmul.f32 %v625, %v631
        %v639 = vmul.f32 %v626, %v635
        %640 = vrot.lane.b32.xlu0 %v530, 113
        %v641 = vpop.permute.xlu0 %640
        %642 = vrot.lane.b32.xlu0 %v534, 113
        %v643 = vpop.permute.xlu0 %642
        %vm644 = vcmp.lt.s32.totalorder %v542, 113
        %v645 = vsel %vm644, %v641, %v643
        %v646 = vsel %vm644, %v643, %v641
        %v648 = vlaneseq
        %v649 = vshrl.u32 %v648, 7
        %v650 = vsub.s32 0, %v649
        %v651 = vrot.slane %v426, %v650
        %v652 = vlaneseq
        %v653 = vshrl.u32 %v652, 7
        %v654 = vsub.s32 1, %v653
        %v655 = vrot.slane %v426, %v654
        %v658 = vmul.f32 %v645, %v651
        %v659 = vmul.f32 %v646, %v655
        %660 = vrot.lane.b32.xlu0 %v530, 112
        %v661 = vpop.permute.xlu0 %660
        %662 = vrot.lane.b32.xlu0 %v534, 112
        %v663 = vpop.permute.xlu0 %662
        %vm664 = vcmp.lt.s32.totalorder %v542, 112
        %v665 = vsel %vm664, %v661, %v663
        %v666 = vsel %vm664, %v663, %v661
        %v668 = vlaneseq
        %v669 = vshrl.u32 %v668, 7
        %v670 = vsub.s32 0, %v669
        %v671 = vrot.slane %v428, %v670
        %v672 = vlaneseq
        %v673 = vshrl.u32 %v672, 7
        %v674 = vsub.s32 1, %v673
        %v675 = vrot.slane %v428, %v674
        %v678 = vmul.f32 %v665, %v671
        %v679 = vmul.f32 %v666, %v675
        %680 = vrot.lane.b32.xlu0 %v530, 111
        %v681 = vpop.permute.xlu0 %680
        %682 = vrot.lane.b32.xlu0 %v534, 111
        %v683 = vpop.permute.xlu0 %682
        %vm684 = vcmp.lt.s32.totalorder %v542, 111
        %v685 = vsel %vm684, %v681, %v683
        %v686 = vsel %vm684, %v683, %v681
        %v688 = vlaneseq
        %v689 = vshrl.u32 %v688, 7
        %v690 = vsub.s32 0, %v689
        %v691 = vrot.slane %v430, %v690
        %v692 = vlaneseq
        %v693 = vshrl.u32 %v692, 7
        %v694 = vsub.s32 1, %v693
        %v695 = vrot.slane %v430, %v694
        %v698 = vmul.f32 %v685, %v691
        %v699 = vmul.f32 %v686, %v695
        %v701 = vlaneseq
        %v702 = vshrl.u32 %v701, 7
        %v703 = vsub.s32 0, %v702
        %v704 = vrot.slane %v525, %v703
        %v705 = vlaneseq
        %v706 = vshrl.u32 %v705, 7
        %v707 = vsub.s32 1, %v706
        %v708 = vrot.slane %v525, %v707
        %711 = vrot.lane.b32.xlu0 %v704, 17
        %v712 = vpop.permute.xlu0 %711
        %713 = vrot.lane.b32.xlu0 %v708, 17
        %v714 = vpop.permute.xlu0 %713
        %v715 = vsel %vm543, %v712, %v714
        %v716 = vsel %vm543, %v714, %v712
        %v717 = vmul.f32 %v716, %v550
        %v718 = vmul.f32 %v715, %v554
        %719 = vrot.lane.b32.xlu0 %v704, 16
        %v720 = vpop.permute.xlu0 %719
        %721 = vrot.lane.b32.xlu0 %v708, 16
        %v722 = vpop.permute.xlu0 %721
        %v723 = vsel %vm563, %v720, %v722
        %v724 = vsel %vm563, %v722, %v720
        %v725 = vmul.f32 %v724, %v570
        %v726 = vmul.f32 %v723, %v574
        %727 = vrot.lane.b32.xlu0 %v704, 15
        %v728 = vpop.permute.xlu0 %727
        %729 = vrot.lane.b32.xlu0 %v708, 15
        %v730 = vpop.permute.xlu0 %729
        %v731 = vsel %vm583, %v728, %v730
        %v732 = vsel %vm583, %v730, %v728
        %v733 = vmul.f32 %v732, %v590
        %v734 = vmul.f32 %v731, %v594
        %735 = vrot.lane.b32.xlu0 %v704, 1
        %v736 = vpop.permute.xlu0 %735
        %737 = vrot.lane.b32.xlu0 %v708, 1
        %v738 = vpop.permute.xlu0 %737
        %v739 = vsel %vm603, %v736, %v738
        %v740 = vsel %vm603, %v738, %v736
        %v741 = vmul.f32 %v740, %v610
        %v742 = vmul.f32 %v739, %v614
        %v743 = vmul.f32 %v525, %v422
        %744 = vrot.lane.b32.xlu0 %v704, 127
        %v745 = vpop.permute.xlu0 %744
        %746 = vrot.lane.b32.xlu0 %v708, 127
        %v747 = vpop.permute.xlu0 %746
        %v748 = vsel %vm624, %v745, %v747
        %v749 = vsel %vm624, %v747, %v745
        %v750 = vmul.f32 %v748, %v631
        %v751 = vmul.f32 %v749, %v635
        %752 = vrot.lane.b32.xlu0 %v704, 113
        %v753 = vpop.permute.xlu0 %752
        %754 = vrot.lane.b32.xlu0 %v708, 113
        %v755 = vpop.permute.xlu0 %754
        %v756 = vsel %vm644, %v753, %v755
        %v757 = vsel %vm644, %v755, %v753
        %v758 = vmul.f32 %v756, %v651
        %v759 = vmul.f32 %v757, %v655
        %760 = vrot.lane.b32.xlu0 %v704, 112
        %v761 = vpop.permute.xlu0 %760
        %762 = vrot.lane.b32.xlu0 %v708, 112
        %v763 = vpop.permute.xlu0 %762
        %v764 = vsel %vm664, %v761, %v763
        %v765 = vsel %vm664, %v763, %v761
        %v766 = vmul.f32 %v764, %v671
        %v767 = vmul.f32 %v765, %v675
        %768 = vrot.lane.b32.xlu0 %v704, 111
        %v769 = vpop.permute.xlu0 %768
        %770 = vrot.lane.b32.xlu0 %v708, 111
        %v771 = vpop.permute.xlu0 %770
        %v772 = vsel %vm684, %v769, %v771
        %v773 = vsel %vm684, %v771, %v769
        %v774 = vmul.f32 %v772, %v691
        %v775 = vmul.f32 %v773, %v695
        %v776 = vstv %s441
        %v777 = vmul.f32 %v776, %v557
        %v778 = vmul.f32 %v776, %v558
        %v779 = vstv %s442
        %v780 = vmul.f32 %v779, %v577
        %v781 = vmul.f32 %v779, %v578
        %v782 = vadd.f32 %v777, %v780
        %v783 = vadd.f32 %v778, %v781
        %v784 = vstv %s443
        %v785 = vmul.f32 %v784, %v597
        %v786 = vmul.f32 %v784, %v598
        %v787 = vadd.f32 %v782, %v785
        %v788 = vadd.f32 %v783, %v786
        %v789 = vstv %s444
        %v790 = vmul.f32 %v789, %v617
        %v791 = vmul.f32 %v789, %v618
        %v792 = vadd.f32 %v787, %v790
        %v793 = vadd.f32 %v788, %v791
        %v794 = vstv %s445
        %v795 = vmul.f32 %v794, %v619
        %v797 = vlaneseq
        %v798 = vshrl.u32 %v797, 7
        %v799 = vsub.s32 0, %v798
        %v800 = vrot.slane %v795, %v799
        %v801 = vlaneseq
        %v802 = vshrl.u32 %v801, 7
        %v803 = vsub.s32 1, %v802
        %v804 = vrot.slane %v795, %v803
        %v807 = vadd.f32 %v792, %v800
        %v808 = vadd.f32 %v793, %v804
        %v809 = vstv %s446
        %v810 = vmul.f32 %v809, %v638
        %v811 = vmul.f32 %v809, %v639
        %v812 = vadd.f32 %v807, %v810
        %v813 = vadd.f32 %v808, %v811
        %v814 = vstv %s447
        %v815 = vmul.f32 %v814, %v658
        %v816 = vmul.f32 %v814, %v659
        %v817 = vadd.f32 %v812, %v815
        %v818 = vadd.f32 %v813, %v816
        %v819 = vstv %s448
        %v820 = vmul.f32 %v819, %v678
        %v821 = vmul.f32 %v819, %v679
        %v822 = vadd.f32 %v817, %v820
        %v823 = vadd.f32 %v818, %v821
        %v824 = vstv %s449
        %v825 = vmul.f32 %v824, %v698
        %v826 = vmul.f32 %v824, %v699
        %v827 = vadd.f32 %v822, %v825
        %v828 = vadd.f32 %v823, %v826
        %v829 = vstv %s450
        %v830 = vmul.f32 %v829, %v717
        %v831 = vmul.f32 %v829, %v718
        %v832 = vadd.f32 %v827, %v830
        %v833 = vadd.f32 %v828, %v831
        %v834 = vstv %s451
        %v835 = vmul.f32 %v834, %v725
        %v836 = vmul.f32 %v834, %v726
        %v837 = vadd.f32 %v832, %v835
        %v838 = vadd.f32 %v833, %v836
        %v839 = vstv %s452
        %v840 = vmul.f32 %v839, %v733
        %v841 = vmul.f32 %v839, %v734
        %v842 = vadd.f32 %v837, %v840
        %v843 = vadd.f32 %v838, %v841
        %v844 = vstv %s453
        %v845 = vmul.f32 %v844, %v741
        %v846 = vmul.f32 %v844, %v742
        %v847 = vadd.f32 %v842, %v845
        %v848 = vadd.f32 %v843, %v846
        %v849 = vstv %s454
        %v850 = vmul.f32 %v849, %v743
        %v852 = vlaneseq
        %v853 = vshrl.u32 %v852, 7
        %v854 = vsub.s32 0, %v853
        %v855 = vrot.slane %v850, %v854
        %v856 = vlaneseq
        %v857 = vshrl.u32 %v856, 7
        %v858 = vsub.s32 1, %v857
        %v859 = vrot.slane %v850, %v858
        %v862 = vadd.f32 %v847, %v855
        %v863 = vadd.f32 %v848, %v859
        %v864 = vstv %s455
        %v865 = vmul.f32 %v864, %v750
        %v866 = vmul.f32 %v864, %v751
        %v867 = vadd.f32 %v862, %v865
        %v868 = vadd.f32 %v863, %v866
        %v869 = vstv %s456
        %v870 = vmul.f32 %v869, %v758
        %v871 = vmul.f32 %v869, %v759
        %v872 = vadd.f32 %v867, %v870
        %v873 = vadd.f32 %v868, %v871
        %v874 = vstv %s457
        %v875 = vmul.f32 %v874, %v766
        %v876 = vmul.f32 %v874, %v767
        %v877 = vadd.f32 %v872, %v875
        %v878 = vadd.f32 %v873, %v876
        %v879 = vstv %s458
        %v880 = vmul.f32 %v879, %v774
        %v881 = vmul.f32 %v879, %v775
        %v882 = vadd.f32 %v877, %v880
        %v883 = vadd.f32 %v878, %v881
        %v884 = vstv %s477
        %v885 = vadd.f32 %v882, %v884
        %v886 = vadd.f32 %v883, %v884
        %v887 = vmax.f32 %v885, 0.0
        %v888 = vmax.f32 %v886, 0.0
        %v889 = vstv %s459
        %v890 = vmul.f32 %v889, %v557
        %v891 = vmul.f32 %v889, %v558
        %v892 = vstv %s460
        %v893 = vmul.f32 %v892, %v577
        %v894 = vmul.f32 %v892, %v578
        %v895 = vadd.f32 %v890, %v893
        %v896 = vadd.f32 %v891, %v894
        %v897 = vstv %s461
        %v898 = vmul.f32 %v897, %v597
        %v899 = vmul.f32 %v897, %v598
        %v900 = vadd.f32 %v895, %v898
        %v901 = vadd.f32 %v896, %v899
        %v902 = vstv %s462
        %v903 = vmul.f32 %v902, %v617
        %v904 = vmul.f32 %v902, %v618
        %v905 = vadd.f32 %v900, %v903
        %v906 = vadd.f32 %v901, %v904
        %v907 = vstv %s463
        %v908 = vmul.f32 %v907, %v619
        %v910 = vlaneseq
        %v911 = vshrl.u32 %v910, 7
        %v912 = vsub.s32 0, %v911
        %v913 = vrot.slane %v908, %v912
        %v914 = vlaneseq
        %v915 = vshrl.u32 %v914, 7
        %v916 = vsub.s32 1, %v915
        %v917 = vrot.slane %v908, %v916
        %v920 = vadd.f32 %v905, %v913
        %v921 = vadd.f32 %v906, %v917
        %v922 = vstv %s464
        %v923 = vmul.f32 %v922, %v638
        %v924 = vmul.f32 %v922, %v639
        %v925 = vadd.f32 %v920, %v923
        %v926 = vadd.f32 %v921, %v924
        %v927 = vstv %s465
        %v928 = vmul.f32 %v927, %v658
        %v929 = vmul.f32 %v927, %v659
        %v930 = vadd.f32 %v925, %v928
        %v931 = vadd.f32 %v926, %v929
        %v932 = vstv %s466
        %v933 = vmul.f32 %v932, %v678
        %v934 = vmul.f32 %v932, %v679
        %v935 = vadd.f32 %v930, %v933
        %v936 = vadd.f32 %v931, %v934
        %v937 = vstv %s467
        %v938 = vmul.f32 %v937, %v698
        %v939 = vmul.f32 %v937, %v699
        %v940 = vadd.f32 %v935, %v938
        %v941 = vadd.f32 %v936, %v939
        %v942 = vstv %s468
        %v943 = vmul.f32 %v942, %v717
        %v944 = vmul.f32 %v942, %v718
        %v945 = vadd.f32 %v940, %v943
        %v946 = vadd.f32 %v941, %v944
        %v947 = vstv %s469
        %v948 = vmul.f32 %v947, %v725
        %v949 = vmul.f32 %v947, %v726
        %v950 = vadd.f32 %v945, %v948
        %v951 = vadd.f32 %v946, %v949
        %v952 = vstv %s470
        %v953 = vmul.f32 %v952, %v733
        %v954 = vmul.f32 %v952, %v734
        %v955 = vadd.f32 %v950, %v953
        %v956 = vadd.f32 %v951, %v954
        %v957 = vstv %s471
        %v958 = vmul.f32 %v957, %v741
        %v959 = vmul.f32 %v957, %v742
        %v960 = vadd.f32 %v955, %v958
        %v961 = vadd.f32 %v956, %v959
        %v962 = vstv %s472
        %v963 = vmul.f32 %v962, %v743
        %v965 = vlaneseq
        %v966 = vshrl.u32 %v965, 7
        %v967 = vsub.s32 0, %v966
        %v968 = vrot.slane %v963, %v967
        %v969 = vlaneseq
        %v970 = vshrl.u32 %v969, 7
        %v971 = vsub.s32 1, %v970
        %v972 = vrot.slane %v963, %v971
        %v975 = vadd.f32 %v960, %v968
        %v976 = vadd.f32 %v961, %v972
        %v977 = vstv %s473
        %v978 = vmul.f32 %v977, %v750
        %v979 = vmul.f32 %v977, %v751
        %v980 = vadd.f32 %v975, %v978
        %v981 = vadd.f32 %v976, %v979
        %v982 = vstv %s474
        %v983 = vmul.f32 %v982, %v758
        %v984 = vmul.f32 %v982, %v759
        %v985 = vadd.f32 %v980, %v983
        %v986 = vadd.f32 %v981, %v984
        %v987 = vstv %s475
        %v988 = vmul.f32 %v987, %v766
        %v989 = vmul.f32 %v987, %v767
        %v990 = vadd.f32 %v985, %v988
        %v991 = vadd.f32 %v986, %v989
        %v992 = vstv %s476
        %v993 = vmul.f32 %v992, %v774
        %v994 = vmul.f32 %v992, %v775
        %v995 = vadd.f32 %v990, %v993
        %v996 = vadd.f32 %v991, %v994
        %v997 = vstv %s478
        %v998 = vadd.f32 %v995, %v997
        %v999 = vadd.f32 %v996, %v997
        %v1000 = vmax.f32 %v998, 0.0
        %v1001 = vmax.f32 %v999, 0.0
        %v1002 = vstv %s479
        %v1003 = vmul.f32 %v1002, %v887
        %v1004 = vmul.f32 %v1002, %v888
        %v1005 = vstv %s480
        %v1006 = vmul.f32 %v1005, %v1000
        %v1007 = vmul.f32 %v1005, %v1001
        %v1008 = vadd.f32 %v1003, %v1006
        %v1009 = vadd.f32 %v1004, %v1007
        %v1010 = vstv %s487
        %v1011 = vadd.f32 %v1008, %v1010
        %v1012 = vadd.f32 %v1009, %v1010
        %v1015 = vcombine.low %v1011, %v1012
        %v1017 = vunpack.c.l.s4 1966171168
        %v1018 = vunpack.c.0.s8 %v1017
        %v1019 = vlaneseq
        %v1020 = vshrl.u32 %v1019, 7
        %v1021 = vsub.s32 %v1018, %v1020
        %v1022 = vrot.slane %v1015, %v1021
        %v1024 = vunpack.c.l.s4 1966171168
        %v1025 = vunpack.c.0.s8 %v1024
        %v1026 = vlaneseq
        %v1027 = vshrl.u32 %v1026, 7
        %v1028 = vsub.s32 %v1025, %v1027
        %v1029 = vrot.slane %v1022, %v1028
        %v1031 = vlaneseq
        %vm1032 = vcmp.ge.s32.totalorder %v1031, 0
        %vm1033 = vcmp.lt.s32.totalorder %v1031, 256
        %vm1034 = vmand %vm1032, %vm1033
        %1035 = vst.msk [vmem:[%s413] ss:$4 sm:$0x3] %vm1034, %v1029
        %v1036 = vstv %s481
        %v1037 = vmul.f32 %v1036, %v887
        %v1038 = vmul.f32 %v1036, %v888
        %v1039 = vstv %s482
        %v1040 = vmul.f32 %v1039, %v1000
        %v1041 = vmul.f32 %v1039, %v1001
        %v1042 = vadd.f32 %v1037, %v1040
        %v1043 = vadd.f32 %v1038, %v1041
        %v1044 = vstv %s488
        %v1045 = vadd.f32 %v1042, %v1044
        %v1046 = vadd.f32 %v1043, %v1044
        %v1049 = vcombine.low %v1045, %v1046
        %v1051 = vunpack.c.l.s4 1966171168
        %v1052 = vunpack.c.0.s8 %v1051
        %v1053 = vlaneseq
        %v1054 = vshrl.u32 %v1053, 7
        %v1055 = vsub.s32 %v1052, %v1054
        %v1056 = vrot.slane %v1049, %v1055
        %v1058 = vunpack.c.l.s4 1966171168
        %v1059 = vunpack.c.0.s8 %v1058
        %v1060 = vlaneseq
        %v1061 = vshrl.u32 %v1060, 7
        %v1062 = vsub.s32 %v1059, %v1061
        %v1063 = vrot.slane %v1056, %v1062
        %s1065 = scalar_lea.vmem %s413, 1 [#allocation17]
        %1066 = vst.msk [vmem:[%s1065] ss:$4 sm:$0x3] %vm1034, %v1063
        %v1067 = vstv %s483
        %v1068 = vmul.f32 %v1067, %v887
        %v1069 = vmul.f32 %v1067, %v888
        %v1070 = vstv %s484
        %v1071 = vmul.f32 %v1070, %v1000
        %v1072 = vmul.f32 %v1070, %v1001
        %v1073 = vadd.f32 %v1068, %v1071
        %v1074 = vadd.f32 %v1069, %v1072
        %v1075 = vstv %s489
        %v1076 = vadd.f32 %v1073, %v1075
        %v1077 = vadd.f32 %v1074, %v1075
        %v1080 = vcombine.low %v1076, %v1077
        %v1082 = vunpack.c.l.s4 1966171168
        %v1083 = vunpack.c.0.s8 %v1082
        %v1084 = vlaneseq
        %v1085 = vshrl.u32 %v1084, 7
        %v1086 = vsub.s32 %v1083, %v1085
        %v1087 = vrot.slane %v1080, %v1086
        %v1089 = vunpack.c.l.s4 1966171168
        %v1090 = vunpack.c.0.s8 %v1089
        %v1091 = vlaneseq
        %v1092 = vshrl.u32 %v1091, 7
        %v1093 = vsub.s32 %v1090, %v1092
        %v1094 = vrot.slane %v1087, %v1093
        %s1096 = scalar_lea.vmem %s413, 2 [#allocation17]
        %1097 = vst.msk [vmem:[%s1096] ss:$4 sm:$0x3] %vm1034, %v1094
        %v1098 = vstv %s485
        %v1099 = vmul.f32 %v1098, %v887
        %v1100 = vmul.f32 %v1098, %v888
        %v1101 = vstv %s486
        %v1102 = vmul.f32 %v1101, %v1000
        %v1103 = vmul.f32 %v1101, %v1001
        %v1104 = vadd.f32 %v1099, %v1102
        %v1105 = vadd.f32 %v1100, %v1103
        %v1106 = vstv %s490
        %v1107 = vadd.f32 %v1104, %v1106
        %v1108 = vadd.f32 %v1105, %v1106
        %v1111 = vcombine.low %v1107, %v1108
        %v1113 = vunpack.c.l.s4 1966171168
        %v1114 = vunpack.c.0.s8 %v1113
        %v1115 = vlaneseq
        %v1116 = vshrl.u32 %v1115, 7
        %v1117 = vsub.s32 %v1114, %v1116
        %v1118 = vrot.slane %v1111, %v1117
        %v1120 = vunpack.c.l.s4 1966171168
        %v1121 = vunpack.c.0.s8 %v1120
        %v1122 = vlaneseq
        %v1123 = vshrl.u32 %v1122, 7
        %v1124 = vsub.s32 %v1121, %v1123
        %v1125 = vrot.slane %v1118, %v1124
        %s1127 = scalar_lea.vmem %s413, 3 [#allocation17]
        %1128 = vst.msk [vmem:[%s1127] ss:$4 sm:$0x3] %vm1034, %v1125
        %s1129 = sand.u32 %s211, 1
        %s1130 = scalar_lea.sflag [#allocation4], %s1129
        %s1131 = sand.u32 %s211, 1
        %s1132 = smul.addr %s1131, 8
        %s1133 = scalar_lea.vmem [#allocation17], %s1132
        // Predicated region
        $region85: #{tpu_custom_call.1} parent=51 // pred_check
          %p1134 = pneg %p221
        $region86: #{tpu_custom_call.1} parent=51 // pred_check_branch
          %1136 = sbr.rel (%p1134) target = $region88
        $region87: #{tpu_custom_call.1} parent=51 // pred_region
          %s1138 = ssub.s32 128, 128
          %1139 = vsyncadd %s1130, %s1138
          %s1140 = smul.addr %s30, 2
          %s1141 = smul.addr %s1140, 64
          %s1142 = scalar_lea.hbm %s8, %s1141
          %s1144 = sshll.u32 %s1133, 4
          %s1145 = int_to_ptr.vmem [resolvable:$true] %s1144
          %1147 = dma.vmem_to_hbm [thread:$0]  %s1145, 128, %s1142, %s1130
        $region88: #{tpu_custom_call.1} parent=51 // pred_fallthru
          _
      $region52: #{tpu_custom_call.1} parent=5 // pred_fallthru
        _
      %p1148 = scmp.le.s32.totalorder 2, %s25
      // Predicated region
      $region89: #{tpu_custom_call.1} parent=5 // pred_check
        %p1149 = pneg %p1148
      $region90: #{tpu_custom_call.1} parent=5 // pred_check_branch
        %1151 = sbr.rel (%p1149) target = $region92
      $region91: #{tpu_custom_call.1} parent=5 // pred_region
        %s1152 = ssub.s32 %s25, 2
        // Predicated region
        $region93: #{tpu_custom_call.1} parent=91 // pred_check
          %p1153 = pneg %p227
        $region94: #{tpu_custom_call.1} parent=91 // pred_check_branch
          %1155 = sbr.rel (%p1153) target = $region96
        $region95: #{tpu_custom_call.1} parent=91 // pred_region
          %s1156 = sand.u32 %s212, 1
          %s1157 = scalar_lea.sflag [#allocation4], %s1156
          %s1158 = sand.u32 %s212, 1
          %s1159 = smul.addr %s1158, 8
          %s1160 = scalar_lea.vmem [#allocation17], %s1159
          %1161 = dma.done %s1157, 128
        $region96: #{tpu_custom_call.1} parent=91 // pred_fallthru
          _
      $region92: #{tpu_custom_call.1} parent=5 // pred_fallthru
        _
    $region6: #{tpu_custom_call.1} parent=1 // loop_footer
      %s29 = sadd.s32 1, %s25
    $region7: #{tpu_custom_call.1} parent=1 // loop_footer_branch
      %24 = sbr.rel target = $region3
    $region8: #{tpu_custom_call.1} parent=1 // loop_exit
      _
    %1162 = vsyncpa [#allocation3], 1
    %s1163 = scalar_lea.sflag [#allocation3], 1
    %1164 = vsyncpa %s1163, 1
    %1165 = vsyncpa [#allocation7], 1
    %1166 = vsyncpa [#allocation4], 1
    %s1167 = scalar_lea.sflag [#allocation4], 1
    %1168 = vsyncpa %s1167, 1
    %1169 = vsyncpa [#allocation5], 1
    %s1170 = scalar_lea.sflag [#allocation5], 1
    %1171 = vsyncpa %s1170, 1
    %1172 = vsyncpa [#allocation10], 1
    %1173 = vsyncpa [#allocation13], 1
    %1174 = vsyncpa [#allocation16], 1

</llo_original>
